<compile_context>
chip_gen: v7x
topology: tpu7x:2x2x1
jax: 0.10.0
libtpu: 0.0.40
codegen_flags: <defaults>
</compile_context>

<pallas_src>
import functools
import math

import numpy as np
import jax
import jax.numpy as jnp
from jax.experimental import pallas as pl
from jax.experimental.pallas import tpu as pltpu


# ----------------------------------------------------------------------------
# In-kernel helpers
# ----------------------------------------------------------------------------
def _layer_norm(x, gamma, beta, eps):
    """Fused single-pass LayerNorm over the last axis (f32 math)."""
    d = x.shape[-1]
    s1 = jnp.sum(x, axis=-1, keepdims=True)
    s2 = jnp.sum(x * x, axis=-1, keepdims=True)
    mean = s1 / d
    var = jnp.maximum(s2 / d - mean * mean, 0.0)
    return (x - mean) * jax.lax.rsqrt(var + eps) * gamma + beta


# ----------------------------------------------------------------------------
# Fused EncoderLayer kernel. Grid = (B, L // TQ); K/V/Q projected once per
# batch element (q-tile 0) into VMEM scratch, attention + FFN per query tile.
# ----------------------------------------------------------------------------
def _encoder_layer_kernel(x_ref, bias_ref, npm_ref,
                          wqkv_ref, bqkv_ref, wf_ref, bf_ref, g1_ref, be1_ref,
                          w1_ref, b1_ref, w2_ref, b2_ref, g2_ref, be2_ref,
                          out_ref, *rest,
                          n_head, d_k, d_v, tq, return_attn, eps=1e-5):
    if return_attn:
        attn_ref, q_scr, k_scr, v_scr = rest
    else:
        attn_ref = None
        q_scr, k_scr, v_scr = rest

    H = n_head
    mm = wqkv_ref.dtype                 # matmul-input dtype (bf16 or f32)
    qi = pl.program_id(1)

    # ---- Packed QKV projection for the full sequence, once per batch elem ----
    @pl.when(qi == 0)
    def _():
        x_full = x_ref[0]                                            # (L, D) f32
        qkv = jnp.dot(x_full.astype(mm), wqkv_ref[...],
                      preferred_element_type=jnp.float32) + bqkv_ref[...]
        qo, ko, vo = 0, H * d_k, 2 * H * d_k
        for h in range(H):                                           # static unroll
            q_scr[h] = qkv[:, qo + h * d_k: qo + (h + 1) * d_k]          # f32
            k_scr[h] = qkv[:, ko + h * d_k: ko + (h + 1) * d_k].astype(k_scr.dtype)
            v_scr[h] = qkv[:, vo + h * d_v: vo + (h + 1) * d_v].astype(v_scr.dtype)

    # ---- Multi-head self-attention for this query tile ----
    row0 = pl.multiple_of(qi * tq, tq)
    x_tile = x_ref[0, pl.ds(row0, tq), :]                            # (TQ, D) residual
    npm = npm_ref[0]                                                 # (TQ, 1)
    bias = bias_ref[0]                                               # (1|TQ, L) additive mask

    qh = q_scr[:, pl.ds(row0, tq), :].astype(mm)                     # (H, TQ, d_k)
    logits = jnp.einsum('hqd,hkd->hqk', qh, k_scr[...],
                        preferred_element_type=jnp.float32)          # (H, TQ, L)
    logits = logits + bias[None]                                     # masked -> -1e30
    m = jnp.max(logits, axis=-1, keepdims=True)
    e = jnp.exp(logits - m)
    s = jnp.sum(e, axis=-1, keepdims=True)
    attn = e * pl.reciprocal(s, approx=True)                         # softmax (f32)
    if attn_ref is not None:
        attn_ref[...] = attn[:, None].astype(attn_ref.dtype)         # (H, 1, TQ, L)

    ctx = jnp.einsum('hqk,hkd->hqd', attn.astype(mm), v_scr[...],
                     preferred_element_type=jnp.float32)             # (H, TQ, d_v)
    # concat heads -> single K = H*d_v contraction (== concat(heads) @ Wf^T)
    ctx_packed = jnp.concatenate([ctx[h] for h in range(H)], axis=-1)
    fc = jnp.dot(ctx_packed.astype(mm), wf_ref[...],
                 preferred_element_type=jnp.float32) + bf_ref[...]   # (TQ, D)

    y = _layer_norm(fc + x_tile, g1_ref[...], be1_ref[...], eps) * npm

    # ---- Position-wise feed-forward for this query tile ----
    h1 = jnp.maximum(jnp.dot(y.astype(mm), w1_ref[...],
                             preferred_element_type=jnp.float32) + b1_ref[...], 0.0)
    h2 = jnp.dot(h1.astype(mm), w2_ref[...],
                 preferred_element_type=jnp.float32) + b2_ref[...]

    out = _layer_norm(h2 + y, g2_ref[...], be2_ref[...], eps) * npm
    out_ref[0] = out.astype(out_ref.dtype)


# ----------------------------------------------------------------------------
# Wrapper: weight preprocessing + pallas_call
# ----------------------------------------------------------------------------
def _replicated_spec(arr):
    nd = arr.ndim
    return pl.BlockSpec(arr.shape, lambda b, q, nd=nd: (0,) * nd)


def _prep_params(params, n_head, d_k, d_v, mm_dtype):
    """PyTorch nn.Linear layouts -> packed QKV, pre-transposed, scale-folded."""
    wq, bq, wk, bk, wv, bv, wf, bf, g1, be1 = params["slf"]
    w1, b1, w2, b2, g2, be2 = params["ffn"]
    temp = jnp.float32(np.power(d_k, 0.5))
    # nn.Linear: y = x @ W^T + b (W is (out, in)); fold 1/temperature into Q.
    wqkv = jnp.concatenate([jnp.transpose(wq) / temp,
                            jnp.transpose(wk),
                            jnp.transpose(wv)], axis=1).astype(mm_dtype)  # (D, H*(2dk+dv))
    bqkv = jnp.concatenate([bq.reshape(1, -1) / temp,
                            bk.reshape(1, -1),
                            bv.reshape(1, -1)], axis=1)                   # (1, H*(2dk+dv)) f32
    wf_t = jnp.transpose(wf).astype(mm_dtype)   # (H*d_v, D)
    w1_t = jnp.transpose(w1).astype(mm_dtype)   # (D, d_inner)
    w2_t = jnp.transpose(w2).astype(mm_dtype)   # (d_inner, D)
    return (wqkv, bqkv, wf_t, bf, g1, be1, w1_t, b1, w2_t, b2, g2, be2)


def encoder_layer(enc_input, non_pad_mask, slf_attn_mask, params, *,
                  n_head, d_k, d_v, mm_dtype=jnp.bfloat16, return_attn=True,
                  attn_dtype=jnp.float32, tq=None,
                  vmem_limit_bytes=48 * 1024 * 1024):
    B, L, D = enc_input.shape
    if tq is None:
        tq = min(128, L)
    if L % tq != 0:
        tq = L   # TODO(synk): pad L to a multiple of 128 for production shapes
    nq = L // tq

    prepped = _prep_params(params, n_head, d_k, d_v, mm_dtype)

    # Mask -> precomputed additive bias (no -inf NaNs, no in-kernel select).
    # Accepts full (B, L, L) masks or the key-padding (B, 1, L) form.
    bias = jnp.where(slf_attn_mask != 0, jnp.float32(-1e30), jnp.float32(0.0))
    if bias.shape[1] == 1:
        bias_spec = pl.BlockSpec((1, 1, L), lambda b, q: (b, 0, 0))
    else:
        bias_spec = pl.BlockSpec((1, tq, L), lambda b, q: (b, q, 0))

    in_specs = [
        pl.BlockSpec((1, L, D), lambda b, q: (b, 0, 0)),    # full x (QKV proj + residual slice)
        bias_spec,                                          # additive attention bias
        pl.BlockSpec((1, tq, 1), lambda b, q: (b, q, 0)),   # non_pad_mask (query tile)
    ] + [_replicated_spec(p) for p in prepped]

    out_shape = [jax.ShapeDtypeStruct((B, L, D), enc_input.dtype)]
    out_specs = [pl.BlockSpec((1, tq, D), lambda b, q: (b, q, 0))]
    if return_attn:
        out_shape.append(jax.ShapeDtypeStruct((n_head, B, L, L), attn_dtype))
        out_specs.append(pl.BlockSpec((n_head, 1, tq, L), lambda b, q: (0, b, q, 0)))

    kernel = functools.partial(_encoder_layer_kernel, n_head=n_head, d_k=d_k,
                               d_v=d_v, tq=tq, return_attn=return_attn)

    results = pl.pallas_call(
        kernel,
        out_shape=tuple(out_shape),
        grid=(B, nq),
        in_specs=in_specs,
        out_specs=tuple(out_specs),
        scratch_shapes=[
            pltpu.VMEM((n_head, L, d_k), jnp.float32),  # Q (f32 so q-tile slices stay (8,128)-aligned)
            pltpu.VMEM((n_head, L, d_k), mm_dtype),     # K (head-major, full sequence)
            pltpu.VMEM((n_head, L, d_v), mm_dtype),     # V
        ],
        compiler_params=pltpu.CompilerParams(
            dimension_semantics=("parallel", "arbitrary"),   # batch parallel; q carries K/V scratch
            vmem_limit_bytes=vmem_limit_bytes),
    )(enc_input, bias, non_pad_mask, *prepped)

    if return_attn:
        out, attn = results
        # PyTorch returns attn as (n_head * B, Lq, Lk), head-major.
        return out, attn.reshape(n_head * B, L, L)
    (out,) = results
    return out


# ----------------------------------------------------------------------------
# Deterministic parameter initialization (mirrors module __init__ shapes)
# ----------------------------------------------------------------------------
def init_mha_params(key, d_model, n_head, d_k, d_v):
    ks = jax.random.split(key, 8)
    std_qk = math.sqrt(2.0 / (d_model + d_k))
    std_v = math.sqrt(2.0 / (d_model + d_v))
    std_fc = math.sqrt(2.0 / (n_head * d_v + d_model))  # xavier_normal
    wq = std_qk * jax.random.normal(ks[0], (n_head * d_k, d_model), jnp.float32)
    wk = std_qk * jax.random.normal(ks[1], (n_head * d_k, d_model), jnp.float32)
    wv = std_v * jax.random.normal(ks[2], (n_head * d_v, d_model), jnp.float32)
    wf = std_fc * jax.random.normal(ks[3], (d_model, n_head * d_v), jnp.float32)
    bq = 0.02 * jax.random.normal(ks[4], (1, n_head * d_k), jnp.float32)
    bk = 0.02 * jax.random.normal(ks[5], (1, n_head * d_k), jnp.float32)
    bv = 0.02 * jax.random.normal(ks[6], (1, n_head * d_v), jnp.float32)
    bf = 0.02 * jax.random.normal(ks[7], (1, d_model), jnp.float32)
    gamma = jnp.ones((1, d_model), jnp.float32)
    beta = jnp.zeros((1, d_model), jnp.float32)
    return (wq, bq, wk, bk, wv, bv, wf, bf, gamma, beta)


def init_ffn_params(key, d_model, d_inner):
    ks = jax.random.split(key, 4)
    w1 = math.sqrt(1.0 / d_model) * jax.random.normal(ks[0], (d_inner, d_model), jnp.float32)
    b1 = 0.02 * jax.random.normal(ks[1], (1, d_inner), jnp.float32)
    w2 = math.sqrt(1.0 / d_inner) * jax.random.normal(ks[2], (d_model, d_inner), jnp.float32)
    b2 = 0.02 * jax.random.normal(ks[3], (1, d_model), jnp.float32)
    gamma = jnp.ones((1, d_model), jnp.float32)
    beta = jnp.zeros((1, d_model), jnp.float32)
    return (w1, b1, w2, b2, gamma, beta)


# ----------------------------------------------------------------------------
# Pure-JAX reference (for correctness check)
# ----------------------------------------------------------------------------
def _layernorm_ref(x, gamma, beta, eps=1e-5):
    m = x.mean(-1, keepdims=True)
    v = ((x - m) ** 2).mean(-1, keepdims=True)
    return (x - m) / jnp.sqrt(v + eps) * gamma + beta


def _mha_ref(x, mask, prm, n_head, d_k, d_v):
    wq, bq, wk, bk, wv, bv, wf, bf, g, b = prm
    B, L, D = x.shape
    hp = jax.lax.Precision.HIGHEST
    qp = jnp.einsum("bld,od->blo", x, wq, precision=hp) + bq
    kp = jnp.einsum("bld,od->blo", x, wk, precision=hp) + bk
    vp = jnp.einsum("bld,od->blo", x, wv, precision=hp) + bv
    qh = qp.reshape(B, L, n_head, d_k).transpose(2, 0, 1, 3).reshape(n_head * B, L, d_k)
    kh = kp.reshape(B, L, n_head, d_k).transpose(2, 0, 1, 3).reshape(n_head * B, L, d_k)
    vh = vp.reshape(B, L, n_head, d_v).transpose(2, 0, 1, 3).reshape(n_head * B, L, d_v)
    maskr = jnp.tile(mask, (n_head, 1, 1))
    logits = jnp.einsum("bqd,bkd->bqk", qh, kh, precision=hp) / math.sqrt(d_k)
    logits = jnp.where(maskr != 0, -jnp.inf, logits)
    attn = jax.nn.softmax(logits, axis=-1)
    o = jnp.einsum("bqk,bkd->bqd", attn, vh, precision=hp)
    o = o.reshape(n_head, B, L, d_v).transpose(1, 2, 0, 3).reshape(B, L, n_head * d_v)
    o = jnp.einsum("blv,ov->blo", o, wf, precision=hp) + bf
    return _layernorm_ref(o + x, g, b), attn


def _ffn_ref(x, prm):
    w1, b1, w2, b2, g, bt = prm
    hp = jax.lax.Precision.HIGHEST
    h = jnp.maximum(jnp.einsum("bld,od->blo", x, w1, precision=hp) + b1, 0.0)
    y = jnp.einsum("bld,od->blo", h, w2, precision=hp) + b2
    return _layernorm_ref(y + x, g, bt)


def _encoder_ref(x, npm, mask, params, n_head, d_k, d_v):
    o1, a1 = _mha_ref(x, mask, params["slf"], n_head, d_k, d_v)
    o1 = o1 * npm
    o2 = _ffn_ref(o1, params["ffn"])
    o2 = o2 * npm
    return o2, a1


# ----------------------------------------------------------------------------
# Main
# ----------------------------------------------------------------------------
if __name__ == "__main__":
    B, L = 2, 16
    d_model, d_inner, n_head, d_k, d_v = 32, 64, 2, 16, 16

    key = jax.random.PRNGKey(0)
    k_in, k_slf, k_ffn = jax.random.split(key, 3)

    enc_input = jax.random.normal(k_in, (B, L, d_model), jnp.float32)

    # Padding-based attention mask (1 == masked): batch 1 pads the last 4 positions.
    pad = jnp.stack([jnp.zeros((L,), jnp.float32),
                     (jnp.arange(L) >= L - 4).astype(jnp.float32)])
    slf_attn_mask = jnp.broadcast_to(pad[:, None, :], (B, L, L))
    non_pad_mask = (1.0 - pad)[:, :, None]

    params = {
        "slf": init_mha_params(k_slf, d_model, n_head, d_k, d_v),
        "ffn": init_ffn_params(k_ffn, d_model, d_inner),
    }

    # f32 matmul path with tq=8 (two query tiles per batch element -> exercises the
    # cached-K/V / q-tiling path), strict check against the HIGHEST-precision reference.
    enc_out, slf_attn = encoder_layer(enc_input, non_pad_mask, slf_attn_mask, params,
                                      n_head=n_head, d_k=d_k, d_v=d_v,
                                      mm_dtype=jnp.float32, tq=8)
    jax.block_until_ready((enc_out, slf_attn))

    ref_out, ref_attn = _encoder_ref(enc_input, non_pad_mask, slf_attn_mask,
                                     params, n_head, d_k, d_v)
    np.testing.assert_allclose(np.asarray(enc_out), np.asarray(ref_out), rtol=1e-2, atol=1e-2)
    np.testing.assert_allclose(np.asarray(slf_attn), np.asarray(ref_attn), rtol=1e-2, atol=1e-2)

    # Default fast path: bf16 matmul inputs (f32 accumulate / softmax / LN), key-padding-form
    # mask (B, 1, L), no attention-map writeback. Loose tolerance vs the f32 reference.
    enc_out_fast = encoder_layer(enc_input, non_pad_mask, pad[:, None, :], params,
                                 n_head=n_head, d_k=d_k, d_v=d_v,
                                 return_attn=False, tq=8)
    jax.block_until_ready(enc_out_fast)
    np.testing.assert_allclose(np.asarray(enc_out_fast), np.asarray(ref_out),
                               rtol=1e-1, atol=1e-1)

    assert enc_out.shape == (B, L, d_model)
    assert slf_attn.shape == (n_head * B, L, L)
    print("KERNEL_OK")
</pallas_src>

<mosaic_0001>
module attributes {stable_mosaic.version = 11 : i64} {
  func.func @_encoder_layer_kernel(%arg0: i32, %arg1: i32, %arg2: memref<1x16x32xf32, #tpu.memory_space<vmem>>, %arg3: memref<1x8x16xf32, #tpu.memory_space<vmem>>, %arg4: memref<1x8x1xf32, #tpu.memory_space<vmem>>, %arg5: memref<32x96xf32, #tpu.memory_space<vmem>>, %arg6: memref<1x96xf32, #tpu.memory_space<vmem>>, %arg7: memref<32x32xf32, #tpu.memory_space<vmem>>, %arg8: memref<1x32xf32, #tpu.memory_space<vmem>>, %arg9: memref<1x32xf32, #tpu.memory_space<vmem>>, %arg10: memref<1x32xf32, #tpu.memory_space<vmem>>, %arg11: memref<32x64xf32, #tpu.memory_space<vmem>>, %arg12: memref<1x64xf32, #tpu.memory_space<vmem>>, %arg13: memref<64x32xf32, #tpu.memory_space<vmem>>, %arg14: memref<1x32xf32, #tpu.memory_space<vmem>>, %arg15: memref<1x32xf32, #tpu.memory_space<vmem>>, %arg16: memref<1x32xf32, #tpu.memory_space<vmem>>, %arg17: memref<1x8x32xf32, #tpu.memory_space<vmem>>, %arg18: memref<2x1x8x16xf32, #tpu.memory_space<vmem>>, %arg19: memref<2x16x16xf32, #tpu.memory_space<vmem>>, %arg20: memref<2x16x16xf32, #tpu.memory_space<vmem>>, %arg21: memref<2x16x16xf32, #tpu.memory_space<vmem>>) attributes {dimension_semantics = [#tpu.dimension_semantics<parallel>, #tpu.dimension_semantics<arbitrary>], iteration_bounds = array<i64: 2, 2>, scalar_prefetch = 0 : i64, scratch_operands = 3 : i64, tpu.core_type = #tpu.core_type<tc>, window_params = [{transform_indices = @transform_0, window_bounds = array<i64: 1, 16, 32>}, {transform_indices = @transform_1, window_bounds = array<i64: 1, 8, 16>}, {transform_indices = @transform_2, window_bounds = array<i64: 1, 8, 1>}, {pipeline_mode = #tpu.pipeline_mode<synchronous>, transform_indices = @transform_3, window_bounds = array<i64: 32, 96>}, {pipeline_mode = #tpu.pipeline_mode<synchronous>, transform_indices = @transform_4, window_bounds = array<i64: 1, 96>}, {pipeline_mode = #tpu.pipeline_mode<synchronous>, transform_indices = @transform_5, window_bounds = array<i64: 32, 32>}, {pipeline_mode = #tpu.pipeline_mode<synchronous>, transform_indices = @transform_6, window_bounds = array<i64: 1, 32>}, {pipeline_mode = #tpu.pipeline_mode<synchronous>, transform_indices = @transform_7, window_bounds = array<i64: 1, 32>}, {pipeline_mode = #tpu.pipeline_mode<synchronous>, transform_indices = @transform_8, window_bounds = array<i64: 1, 32>}, {pipeline_mode = #tpu.pipeline_mode<synchronous>, transform_indices = @transform_9, window_bounds = array<i64: 32, 64>}, {pipeline_mode = #tpu.pipeline_mode<synchronous>, transform_indices = @transform_10, window_bounds = array<i64: 1, 64>}, {pipeline_mode = #tpu.pipeline_mode<synchronous>, transform_indices = @transform_11, window_bounds = array<i64: 64, 32>}, {pipeline_mode = #tpu.pipeline_mode<synchronous>, transform_indices = @transform_12, window_bounds = array<i64: 1, 32>}, {pipeline_mode = #tpu.pipeline_mode<synchronous>, transform_indices = @transform_13, window_bounds = array<i64: 1, 32>}, {pipeline_mode = #tpu.pipeline_mode<synchronous>, transform_indices = @transform_14, window_bounds = array<i64: 1, 32>}, {transform_indices = @transform_15, window_bounds = array<i64: 1, 8, 32>}, {transform_indices = @transform_16, window_bounds = array<i64: 2, 1, 8, 16>}]} {
    %c0_i32 = arith.constant 0 : i32
    %0 = arith.cmpi eq, %arg1, %c0_i32 : i32
    %1 = arith.extui %0 : i1 to i32
    %c0_i32_0 = arith.constant 0 : i32
    %2 = arith.cmpi ne, %1, %c0_i32_0 : i32
    scf.if %2 {
      %c0_62 = arith.constant 0 : index
      %c0_63 = arith.constant 0 : index
      %c0_64 = arith.constant 0 : index
      %116 = vector.load %arg2[%c0_62, %c0_63, %c0_64] : memref<1x16x32xf32, #tpu.memory_space<vmem>>, vector<1x16x32xf32>
      %117 = vector.shape_cast %116 : vector<1x16x32xf32> to vector<16x32xf32>
      %c0_65 = arith.constant 0 : index
      %c0_66 = arith.constant 0 : index
      %118 = vector.load %arg5[%c0_65, %c0_66] : memref<32x96xf32, #tpu.memory_space<vmem>>, vector<32x96xf32>
      %cst_67 = arith.constant dense<0.000000e+00> : vector<16x96xf32>
      %119 = tpu.matmul %117, %118, %cst_67 {dimension_numbers = #tpu.dot_dimension_numbers<[1], [0], [0], [1], [0, 0, 1, 1], [], []>} : vector<16x32xf32>, vector<32x96xf32>, vector<16x96xf32> -> vector<16x96xf32>
      %c0_68 = arith.constant 0 : index
      %c0_69 = arith.constant 0 : index
      %120 = vector.load %arg6[%c0_68, %c0_69] : memref<1x96xf32, #tpu.memory_space<vmem>>, vector<1x96xf32>
      %121 = vector.broadcast %120 : vector<1x96xf32> to vector<16x96xf32>
      %122 = arith.addf %119, %121 : vector<16x96xf32>
      %123 = vector.extract_strided_slice %122 {offsets = [0, 0], sizes = [16, 16], strides = [1, 1]} : vector<16x96xf32> to vector<16x16xf32>
      %c0_70 = arith.constant 0 : index
      %c0_71 = arith.constant 0 : index
      %c0_72 = arith.constant 0 : index
      %124 = vector.load %arg19[%c0_70, %c0_71, %c0_72] : memref<2x16x16xf32, #tpu.memory_space<vmem>>, vector<1x16x16xf32>
      %125 = vector.shape_cast %124 : vector<1x16x16xf32> to vector<16x16xf32>
      %126 = vector.shape_cast %123 : vector<16x16xf32> to vector<1x16x16xf32>
      tpu.vector_store %arg19[%c0_70, %c0_71, %c0_72], %126 {strides = array<i32>} : memref<2x16x16xf32, #tpu.memory_space<vmem>>, vector<1x16x16xf32>,
      %127 = vector.extract_strided_slice %122 {offsets = [0, 32], sizes = [16, 16], strides = [1, 1]} : vector<16x96xf32> to vector<16x16xf32>
      %c0_73 = arith.constant 0 : index
      %c0_74 = arith.constant 0 : index
      %c0_75 = arith.constant 0 : index
      %128 = vector.load %arg20[%c0_73, %c0_74, %c0_75] : memref<2x16x16xf32, #tpu.memory_space<vmem>>, vector<1x16x16xf32>
      %129 = vector.shape_cast %128 : vector<1x16x16xf32> to vector<16x16xf32>
      %130 = vector.shape_cast %127 : vector<16x16xf32> to vector<1x16x16xf32>
      tpu.vector_store %arg20[%c0_73, %c0_74, %c0_75], %130 {strides = array<i32>} : memref<2x16x16xf32, #tpu.memory_space<vmem>>, vector<1x16x16xf32>,
      %131 = vector.extract_strided_slice %122 {offsets = [0, 64], sizes = [16, 16], strides = [1, 1]} : vector<16x96xf32> to vector<16x16xf32>
      %c0_76 = arith.constant 0 : index
      %c0_77 = arith.constant 0 : index
      %c0_78 = arith.constant 0 : index
      %132 = vector.load %arg21[%c0_76, %c0_77, %c0_78] : memref<2x16x16xf32, #tpu.memory_space<vmem>>, vector<1x16x16xf32>
      %133 = vector.shape_cast %132 : vector<1x16x16xf32> to vector<16x16xf32>
      %134 = vector.shape_cast %131 : vector<16x16xf32> to vector<1x16x16xf32>
      tpu.vector_store %arg21[%c0_76, %c0_77, %c0_78], %134 {strides = array<i32>} : memref<2x16x16xf32, #tpu.memory_space<vmem>>, vector<1x16x16xf32>,
      %135 = vector.extract_strided_slice %122 {offsets = [0, 16], sizes = [16, 16], strides = [1, 1]} : vector<16x96xf32> to vector<16x16xf32>
      %c1 = arith.constant 1 : index
      %c0_79 = arith.constant 0 : index
      %c0_80 = arith.constant 0 : index
      %136 = vector.load %arg19[%c1, %c0_79, %c0_80] : memref<2x16x16xf32, #tpu.memory_space<vmem>>, vector<1x16x16xf32>
      %137 = vector.shape_cast %136 : vector<1x16x16xf32> to vector<16x16xf32>
      %138 = vector.shape_cast %135 : vector<16x16xf32> to vector<1x16x16xf32>
      tpu.vector_store %arg19[%c1, %c0_79, %c0_80], %138 {strides = array<i32>} : memref<2x16x16xf32, #tpu.memory_space<vmem>>, vector<1x16x16xf32>,
      %139 = vector.extract_strided_slice %122 {offsets = [0, 48], sizes = [16, 16], strides = [1, 1]} : vector<16x96xf32> to vector<16x16xf32>
      %c1_81 = arith.constant 1 : index
      %c0_82 = arith.constant 0 : index
      %c0_83 = arith.constant 0 : index
      %140 = vector.load %arg20[%c1_81, %c0_82, %c0_83] : memref<2x16x16xf32, #tpu.memory_space<vmem>>, vector<1x16x16xf32>
      %141 = vector.shape_cast %140 : vector<1x16x16xf32> to vector<16x16xf32>
      %142 = vector.shape_cast %139 : vector<16x16xf32> to vector<1x16x16xf32>
      tpu.vector_store %arg20[%c1_81, %c0_82, %c0_83], %142 {strides = array<i32>} : memref<2x16x16xf32, #tpu.memory_space<vmem>>, vector<1x16x16xf32>,
      %143 = vector.extract_strided_slice %122 {offsets = [0, 80], sizes = [16, 16], strides = [1, 1]} : vector<16x96xf32> to vector<16x16xf32>
      %c1_84 = arith.constant 1 : index
      %c0_85 = arith.constant 0 : index
      %c0_86 = arith.constant 0 : index
      %144 = vector.load %arg21[%c1_84, %c0_85, %c0_86] : memref<2x16x16xf32, #tpu.memory_space<vmem>>, vector<1x16x16xf32>
      %145 = vector.shape_cast %144 : vector<1x16x16xf32> to vector<16x16xf32>
      %146 = vector.shape_cast %143 : vector<16x16xf32> to vector<1x16x16xf32>
      tpu.vector_store %arg21[%c1_84, %c0_85, %c0_86], %146 {strides = array<i32>} : memref<2x16x16xf32, #tpu.memory_space<vmem>>, vector<1x16x16xf32>,
    } else {
    }
    %c8_i32 = arith.constant 8 : i32
    %3 = arith.muli %arg1, %c8_i32 : i32
    %4 = tpu.assume_multiple %3, 8 : i32
    %c0 = arith.constant 0 : index
    %5 = arith.index_cast %4 : i32 to index
    %c0_1 = arith.constant 0 : index
    %6 = vector.load %arg2[%c0, %5, %c0_1] : memref<1x16x32xf32, #tpu.memory_space<vmem>>, vector<1x8x32xf32>
    %7 = vector.shape_cast %6 : vector<1x8x32xf32> to vector<8x32xf32>
    %c0_2 = arith.constant 0 : index
    %c0_3 = arith.constant 0 : index
    %c0_4 = arith.constant 0 : index
    %8 = vector.load %arg4[%c0_2, %c0_3, %c0_4] : memref<1x8x1xf32, #tpu.memory_space<vmem>>, vector<1x8x1xf32>
    %9 = vector.shape_cast %8 : vector<1x8x1xf32> to vector<8x1xf32>
    %c0_5 = arith.constant 0 : index
    %c0_6 = arith.constant 0 : index
    %c0_7 = arith.constant 0 : index
    %10 = vector.load %arg3[%c0_5, %c0_6, %c0_7] : memref<1x8x16xf32, #tpu.memory_space<vmem>>, vector<1x8x16xf32>
    %11 = vector.shape_cast %10 : vector<1x8x16xf32> to vector<8x16xf32>
    %c0_8 = arith.constant 0 : index
    %12 = arith.index_cast %4 : i32 to index
    %c0_9 = arith.constant 0 : index
    %13 = vector.load %arg19[%c0_8, %12, %c0_9] : memref<2x16x16xf32, #tpu.memory_space<vmem>>, vector<2x8x16xf32>
    %c0_10 = arith.constant 0 : index
    %c0_11 = arith.constant 0 : index
    %c0_12 = arith.constant 0 : index
    %14 = vector.load %arg20[%c0_10, %c0_11, %c0_12] : memref<2x16x16xf32, #tpu.memory_space<vmem>>, vector<2x16x16xf32>
    "tpu.trace_start"() <{level = 10 : i32, message = "hqd,hkd->hqk"}> : () -> ()
    %cst = arith.constant dense<0.000000e+00> : vector<2x8x16xf32>
    %15 = tpu.matmul %13, %14, %cst {dimension_numbers = #tpu.dot_dimension_numbers<[2], [2], [1], [1], [0, 0, 0, 1, 1, 1], [0], [0]>} : vector<2x8x16xf32>, vector<2x16x16xf32>, vector<2x8x16xf32> -> vector<2x8x16xf32>
    "tpu.trace_stop"() : () -> ()
    %16 = vector.shape_cast %11 : vector<8x16xf32> to vector<1x8x16xf32>
    %17 = vector.broadcast %16 : vector<1x8x16xf32> to vector<2x8x16xf32>
    %18 = arith.addf %15, %17 : vector<2x8x16xf32>
    %cst_13 = arith.constant dense<0xFF800000> : vector<2x8xf32>
    %19 = vector.multi_reduction <maximumf>, %18, %cst_13 [2] : vector<2x8x16xf32> to vector<2x8xf32>
    %20 = vector.shape_cast %19 : vector<2x8xf32> to vector<2x8x1xf32>
    %21 = vector.broadcast %20 : vector<2x8x1xf32> to vector<2x8x16xf32>
    %22 = arith.subf %18, %21 : vector<2x8x16xf32>
    %23 = math.exp %22 : vector<2x8x16xf32>
    %cst_14 = arith.constant dense<0.000000e+00> : vector<2x8xf32>
    %24 = vector.multi_reduction <add>, %23, %cst_14 [2] : vector<2x8x16xf32> to vector<2x8xf32>
    %25 = vector.shape_cast %24 : vector<2x8xf32> to vector<2x8x1xf32>
    %26 = tpu.reciprocal %25 {approx = true} : vector<2x8x1xf32> -> vector<2x8x1xf32>
    %27 = vector.broadcast %26 : vector<2x8x1xf32> to vector<2x8x16xf32>
    %28 = arith.mulf %23, %27 : vector<2x8x16xf32>
    %29 = vector.shape_cast %28 : vector<2x8x16xf32> to vector<2x1x8x16xf32>
    %c0_15 = arith.constant 0 : index
    %c0_16 = arith.constant 0 : index
    %c0_17 = arith.constant 0 : index
    %c0_18 = arith.constant 0 : index
    %30 = vector.load %arg18[%c0_15, %c0_16, %c0_17, %c0_18] : memref<2x1x8x16xf32, #tpu.memory_space<vmem>>, vector<2x1x8x16xf32>
    tpu.vector_store %arg18[%c0_15, %c0_16, %c0_17, %c0_18], %29 {strides = array<i32>} : memref<2x1x8x16xf32, #tpu.memory_space<vmem>>, vector<2x1x8x16xf32>,
    %c0_19 = arith.constant 0 : index
    %c0_20 = arith.constant 0 : index
    %c0_21 = arith.constant 0 : index
    %31 = vector.load %arg21[%c0_19, %c0_20, %c0_21] : memref<2x16x16xf32, #tpu.memory_space<vmem>>, vector<2x16x16xf32>
    "tpu.trace_start"() <{level = 10 : i32, message = "hqk,hkd->hqd"}> : () -> ()
    %cst_22 = arith.constant dense<0.000000e+00> : vector<2x8x16xf32>
    %32 = tpu.matmul %28, %31, %cst_22 {dimension_numbers = #tpu.dot_dimension_numbers<[2], [1], [1], [2], [0, 0, 0, 1, 1, 2], [0], [0]>} : vector<2x8x16xf32>, vector<2x16x16xf32>, vector<2x8x16xf32> -> vector<2x8x16xf32>
    "tpu.trace_stop"() : () -> ()
    %33 = vector.extract_strided_slice %32 {offsets = [0, 0, 0], sizes = [1, 8, 16], strides = [1, 1, 1]} : vector<2x8x16xf32> to vector<1x8x16xf32>
    %34 = vector.shape_cast %33 : vector<1x8x16xf32> to vector<8x16xf32>
    %35 = vector.extract_strided_slice %32 {offsets = [1, 0, 0], sizes = [1, 8, 16], strides = [1, 1, 1]} : vector<2x8x16xf32> to vector<1x8x16xf32>
    %36 = vector.shape_cast %35 : vector<1x8x16xf32> to vector<8x16xf32>
    %37 = tpu.concatenate %34, %36 in 1 : vector<8x16xf32>, vector<8x16xf32> -> vector<8x32xf32>
    %c0_23 = arith.constant 0 : index
    %c0_24 = arith.constant 0 : index
    %38 = vector.load %arg7[%c0_23, %c0_24] : memref<32x32xf32, #tpu.memory_space<vmem>>, vector<32x32xf32>
    %cst_25 = arith.constant dense<0.000000e+00> : vector<8x32xf32>
    %39 = tpu.matmul %37, %38, %cst_25 {dimension_numbers = #tpu.dot_dimension_numbers<[1], [0], [0], [1], [0, 0, 1, 1], [], []>} : vector<8x32xf32>, vector<32x32xf32>, vector<8x32xf32> -> vector<8x32xf32>
    %c0_26 = arith.constant 0 : index
    %c0_27 = arith.constant 0 : index
    %40 = vector.load %arg8[%c0_26, %c0_27] : memref<1x32xf32, #tpu.memory_space<vmem>>, vector<1x32xf32>
    %41 = vector.broadcast %40 : vector<1x32xf32> to vector<8x32xf32>
    %42 = arith.addf %39, %41 : vector<8x32xf32>
    %43 = arith.addf %42, %7 : vector<8x32xf32>
    %c0_28 = arith.constant 0 : index
    %c0_29 = arith.constant 0 : index
    %44 = vector.load %arg9[%c0_28, %c0_29] : memref<1x32xf32, #tpu.memory_space<vmem>>, vector<1x32xf32>
    %c0_30 = arith.constant 0 : index
    %c0_31 = arith.constant 0 : index
    %45 = vector.load %arg10[%c0_30, %c0_31] : memref<1x32xf32, #tpu.memory_space<vmem>>, vector<1x32xf32>
    %cst_32 = arith.constant dense<0.000000e+00> : vector<8xf32>
    %46 = vector.multi_reduction <add>, %43, %cst_32 [1] : vector<8x32xf32> to vector<8xf32>
    %47 = vector.shape_cast %46 : vector<8xf32> to vector<8x1xf32>
    %48 = arith.mulf %43, %43 : vector<8x32xf32>
    %cst_33 = arith.constant dense<0.000000e+00> : vector<8xf32>
    %49 = vector.multi_reduction <add>, %48, %cst_33 [1] : vector<8x32xf32> to vector<8xf32>
    %50 = vector.shape_cast %49 : vector<8xf32> to vector<8x1xf32>
    %cst_34 = arith.constant 3.200000e+01 : f32
    %51 = vector.broadcast %cst_34 : f32 to vector<8x1xf32>
    %52 = arith.divf %47, %51 : vector<8x1xf32>
    %cst_35 = arith.constant 3.200000e+01 : f32
    %53 = vector.broadcast %cst_35 : f32 to vector<8x1xf32>
    %54 = arith.divf %50, %53 : vector<8x1xf32>
    %55 = arith.mulf %52, %52 : vector<8x1xf32>
    %56 = arith.subf %54, %55 : vector<8x1xf32>
    %cst_36 = arith.constant 0.000000e+00 : f32
    %57 = vector.broadcast %cst_36 : f32 to vector<8x1xf32>
    %58 = arith.maximumf %56, %57 : vector<8x1xf32>
    %59 = vector.broadcast %52 : vector<8x1xf32> to vector<8x32xf32>
    %60 = arith.subf %43, %59 : vector<8x32xf32>
    %cst_37 = arith.constant 9.99999974E-6 : f32
    %61 = vector.broadcast %cst_37 : f32 to vector<8x1xf32>
    %62 = arith.addf %58, %61 : vector<8x1xf32>
    %63 = math.rsqrt %62 : vector<8x1xf32>
    %64 = vector.broadcast %63 : vector<8x1xf32> to vector<8x32xf32>
    %65 = arith.mulf %60, %64 : vector<8x32xf32>
    %66 = vector.broadcast %44 : vector<1x32xf32> to vector<8x32xf32>
    %67 = arith.mulf %65, %66 : vector<8x32xf32>
    %68 = vector.broadcast %45 : vector<1x32xf32> to vector<8x32xf32>
    %69 = arith.addf %67, %68 : vector<8x32xf32>
    %70 = vector.broadcast %9 : vector<8x1xf32> to vector<8x32xf32>
    %71 = arith.mulf %69, %70 : vector<8x32xf32>
    %c0_38 = arith.constant 0 : index
    %c0_39 = arith.constant 0 : index
    %72 = vector.load %arg11[%c0_38, %c0_39] : memref<32x64xf32, #tpu.memory_space<vmem>>, vector<32x64xf32>
    %cst_40 = arith.constant dense<0.000000e+00> : vector<8x64xf32>
    %73 = tpu.matmul %71, %72, %cst_40 {dimension_numbers = #tpu.dot_dimension_numbers<[1], [0], [0], [1], [0, 0, 1, 1], [], []>} : vector<8x32xf32>, vector<32x64xf32>, vector<8x64xf32> -> vector<8x64xf32>
    %c0_41 = arith.constant 0 : index
    %c0_42 = arith.constant 0 : index
    %74 = vector.load %arg12[%c0_41, %c0_42] : memref<1x64xf32, #tpu.memory_space<vmem>>, vector<1x64xf32>
    %75 = vector.broadcast %74 : vector<1x64xf32> to vector<8x64xf32>
    %76 = arith.addf %73, %75 : vector<8x64xf32>
    %cst_43 = arith.constant 0.000000e+00 : f32
    %77 = vector.broadcast %cst_43 : f32 to vector<8x64xf32>
    %78 = arith.maximumf %76, %77 : vector<8x64xf32>
    %c0_44 = arith.constant 0 : index
    %c0_45 = arith.constant 0 : index
    %79 = vector.load %arg13[%c0_44, %c0_45] : memref<64x32xf32, #tpu.memory_space<vmem>>, vector<64x32xf32>
    %cst_46 = arith.constant dense<0.000000e+00> : vector<8x32xf32>
    %80 = tpu.matmul %78, %79, %cst_46 {dimension_numbers = #tpu.dot_dimension_numbers<[1], [0], [0], [1], [0, 0, 1, 1], [], []>} : vector<8x64xf32>, vector<64x32xf32>, vector<8x32xf32> -> vector<8x32xf32>
    %c0_47 = arith.constant 0 : index
    %c0_48 = arith.constant 0 : index
    %81 = vector.load %arg14[%c0_47, %c0_48] : memref<1x32xf32, #tpu.memory_space<vmem>>, vector<1x32xf32>
    %82 = vector.broadcast %81 : vector<1x32xf32> to vector<8x32xf32>
    %83 = arith.addf %80, %82 : vector<8x32xf32>
    %84 = arith.addf %83, %71 : vector<8x32xf32>
    %c0_49 = arith.constant 0 : index
    %c0_50 = arith.constant 0 : index
    %85 = vector.load %arg15[%c0_49, %c0_50] : memref<1x32xf32, #tpu.memory_space<vmem>>, vector<1x32xf32>
    %c0_51 = arith.constant 0 : index
    %c0_52 = arith.constant 0 : index
    %86 = vector.load %arg16[%c0_51, %c0_52] : memref<1x32xf32, #tpu.memory_space<vmem>>, vector<1x32xf32>
    %cst_53 = arith.constant dense<0.000000e+00> : vector<8xf32>
    %87 = vector.multi_reduction <add>, %84, %cst_53 [1] : vector<8x32xf32> to vector<8xf32>
    %88 = vector.shape_cast %87 : vector<8xf32> to vector<8x1xf32>
    %89 = arith.mulf %84, %84 : vector<8x32xf32>
    %cst_54 = arith.constant dense<0.000000e+00> : vector<8xf32>
    %90 = vector.multi_reduction <add>, %89, %cst_54 [1] : vector<8x32xf32> to vector<8xf32>
    %91 = vector.shape_cast %90 : vector<8xf32> to vector<8x1xf32>
    %cst_55 = arith.constant 3.200000e+01 : f32
    %92 = vector.broadcast %cst_55 : f32 to vector<8x1xf32>
    %93 = arith.divf %88, %92 : vector<8x1xf32>
    %cst_56 = arith.constant 3.200000e+01 : f32
    %94 = vector.broadcast %cst_56 : f32 to vector<8x1xf32>
    %95 = arith.divf %91, %94 : vector<8x1xf32>
    %96 = arith.mulf %93, %93 : vector<8x1xf32>
    %97 = arith.subf %95, %96 : vector<8x1xf32>
    %cst_57 = arith.constant 0.000000e+00 : f32
    %98 = vector.broadcast %cst_57 : f32 to vector<8x1xf32>
    %99 = arith.maximumf %97, %98 : vector<8x1xf32>
    %100 = vector.broadcast %93 : vector<8x1xf32> to vector<8x32xf32>
    %101 = arith.subf %84, %100 : vector<8x32xf32>
    %cst_58 = arith.constant 9.99999974E-6 : f32
    %102 = vector.broadcast %cst_58 : f32 to vector<8x1xf32>
    %103 = arith.addf %99, %102 : vector<8x1xf32>
    %104 = math.rsqrt %103 : vector<8x1xf32>
    %105 = vector.broadcast %104 : vector<8x1xf32> to vector<8x32xf32>
    %106 = arith.mulf %101, %105 : vector<8x32xf32>
    %107 = vector.broadcast %85 : vector<1x32xf32> to vector<8x32xf32>
    %108 = arith.mulf %106, %107 : vector<8x32xf32>
    %109 = vector.broadcast %86 : vector<1x32xf32> to vector<8x32xf32>
    %110 = arith.addf %108, %109 : vector<8x32xf32>
    %111 = vector.broadcast %9 : vector<8x1xf32> to vector<8x32xf32>
    %112 = arith.mulf %110, %111 : vector<8x32xf32>
    %c0_59 = arith.constant 0 : index
    %c0_60 = arith.constant 0 : index
    %c0_61 = arith.constant 0 : index
    %113 = vector.load %arg17[%c0_59, %c0_60, %c0_61] : memref<1x8x32xf32, #tpu.memory_space<vmem>>, vector<1x8x32xf32>
    %114 = vector.shape_cast %113 : vector<1x8x32xf32> to vector<8x32xf32>
    %115 = vector.shape_cast %112 : vector<8x32xf32> to vector<1x8x32xf32>
    tpu.vector_store %arg17[%c0_59, %c0_60, %c0_61], %115 {strides = array<i32>} : memref<1x8x32xf32, #tpu.memory_space<vmem>>, vector<1x8x32xf32>,
    return
  }
  func.func @transform_0(%arg0: i32, %arg1: i32) -> (i32, i32, i32) {
    %c0_i32 = arith.constant 0 : i32
    %c0_i32_0 = arith.constant 0 : i32
    %c0_i32_1 = arith.constant 0 : i32
    return %arg0, %c0_i32, %c0_i32_0 : i32, i32, i32
  }
  func.func @transform_1(%arg0: i32, %arg1: i32) -> (i32, i32, i32) {
    %c0_i32 = arith.constant 0 : i32
    %c0_i32_0 = arith.constant 0 : i32
    return %arg0, %arg1, %c0_i32 : i32, i32, i32
  }
  func.func @transform_2(%arg0: i32, %arg1: i32) -> (i32, i32, i32) {
    %c0_i32 = arith.constant 0 : i32
    %c0_i32_0 = arith.constant 0 : i32
    return %arg0, %arg1, %c0_i32 : i32, i32, i32
  }
  func.func @transform_3(%arg0: i32, %arg1: i32) -> (i32, i32) {
    %c0_i32 = arith.constant 0 : i32
    %c0_i32_0 = arith.constant 0 : i32
    %c0_i32_1 = arith.constant 0 : i32
    return %c0_i32, %c0_i32_0 : i32, i32
  }
  func.func @transform_4(%arg0: i32, %arg1: i32) -> (i32, i32) {
    %c0_i32 = arith.constant 0 : i32
    %c0_i32_0 = arith.constant 0 : i32
    %c0_i32_1 = arith.constant 0 : i32
    return %c0_i32, %c0_i32_0 : i32, i32
  }
  func.func @transform_5(%arg0: i32, %arg1: i32) -> (i32, i32) {
    %c0_i32 = arith.constant 0 : i32
    %c0_i32_0 = arith.constant 0 : i32
    %c0_i32_1 = arith.constant 0 : i32
    return %c0_i32, %c0_i32_0 : i32, i32
  }
  func.func @transform_6(%arg0: i32, %arg1: i32) -> (i32, i32) {
    %c0_i32 = arith.constant 0 : i32
    %c0_i32_0 = arith.constant 0 : i32
    %c0_i32_1 = arith.constant 0 : i32
    return %c0_i32, %c0_i32_0 : i32, i32
  }
  func.func @transform_7(%arg0: i32, %arg1: i32) -> (i32, i32) {
    %c0_i32 = arith.constant 0 : i32
    %c0_i32_0 = arith.constant 0 : i32
    %c0_i32_1 = arith.constant 0 : i32
    return %c0_i32, %c0_i32_0 : i32, i32
  }
  func.func @transform_8(%arg0: i32, %arg1: i32) -> (i32, i32) {
    %c0_i32 = arith.constant 0 : i32
    %c0_i32_0 = arith.constant 0 : i32
    %c0_i32_1 = arith.constant 0 : i32
    return %c0_i32, %c0_i32_0 : i32, i32
  }
  func.func @transform_9(%arg0: i32, %arg1: i32) -> (i32, i32) {
    %c0_i32 = arith.constant 0 : i32
    %c0_i32_0 = arith.constant 0 : i32
    %c0_i32_1 = arith.constant 0 : i32
    return %c0_i32, %c0_i32_0 : i32, i32
  }
  func.func @transform_10(%arg0: i32, %arg1: i32) -> (i32, i32) {
    %c0_i32 = arith.constant 0 : i32
    %c0_i32_0 = arith.constant 0 : i32
    %c0_i32_1 = arith.constant 0 : i32
    return %c0_i32, %c0_i32_0 : i32, i32
  }
  func.func @transform_11(%arg0: i32, %arg1: i32) -> (i32, i32) {
    %c0_i32 = arith.constant 0 : i32
    %c0_i32_0 = arith.constant 0 : i32
    %c0_i32_1 = arith.constant 0 : i32
    return %c0_i32, %c0_i32_0 : i32, i32
  }
  func.func @transform_12(%arg0: i32, %arg1: i32) -> (i32, i32) {
    %c0_i32 = arith.constant 0 : i32
    %c0_i32_0 = arith.constant 0 : i32
    %c0_i32_1 = arith.constant 0 : i32
    return %c0_i32, %c0_i32_0 : i32, i32
  }
  func.func @transform_13(%arg0: i32, %arg1: i32) -> (i32, i32) {
    %c0_i32 = arith.constant 0 : i32
    %c0_i32_0 = arith.constant 0 : i32
    %c0_i32_1 = arith.constant 0 : i32
    return %c0_i32, %c0_i32_0 : i32, i32
  }
  func.func @transform_14(%arg0: i32, %arg1: i32) -> (i32, i32) {
    %c0_i32 = arith.constant 0 : i32
    %c0_i32_0 = arith.constant 0 : i32
    %c0_i32_1 = arith.constant 0 : i32
    return %c0_i32, %c0_i32_0 : i32, i32
  }
  func.func @transform_15(%arg0: i32, %arg1: i32) -> (i32, i32, i32) {
    %c0_i32 = arith.constant 0 : i32
    %c0_i32_0 = arith.constant 0 : i32
    return %arg0, %arg1, %c0_i32 : i32, i32, i32
  }
  func.func @transform_16(%arg0: i32, %arg1: i32) -> (i32, i32, i32, i32) {
    %c0_i32 = arith.constant 0 : i32
    %c0_i32_0 = arith.constant 0 : i32
    %c0_i32_1 = arith.constant 0 : i32
    return %c0_i32, %arg0, %arg1, %c0_i32_0 : i32, i32, i32, i32
  }
}

</mosaic_0001>

<llo_original>
// kernel: tpu_custom_call.1
$region0: #{tpu_custom_call.1}
  #allocation0 [shape = 'u32[]', space=smem, size = 0x4, offset = 0x4, fixed_abs, tag = 'smem constant byte address 0x4 - core index']
  #allocation1 [shape = 'u32[144,128]{1,0:T(1,128)}', space=vmem, size = 0x12000, scoped, tag = 'internal scratch']
  #allocation2 [shape = 'f32[2,16,16]{2,1,0:T(8,128)}', space=vmem, size = 0x4000, scoped, tag = 'scratch operand']
  #allocation3 [shape = 'f32[2,16,16]{2,1,0:T(8,128)}', space=vmem, size = 0x4000, scoped, tag = 'scratch operand']
  #allocation4 [shape = 'f32[2,16,16]{2,1,0:T(8,128)}', space=vmem, size = 0x4000, scoped, tag = 'scratch operand']
  %s0 = inlined_call_operand.vmem [shape: f32[2,16,32], index: 0, kind: input, shape index: {}]
  %s1 = inlined_call_operand.vmem [shape: f32[2,16,16], index: 1, kind: input, shape index: {}]
  %s2 = inlined_call_operand.vmem [shape: f32[2,16,1], index: 2, kind: input, shape index: {}]
  %s3 = inlined_call_operand.vmem [shape: f32[32,96], index: 3, kind: input, shape index: {}]
  %s4 = inlined_call_operand.hbm [shape: f32[1,96], index: 4, kind: input, shape index: {}]
  %s5 = inlined_call_operand.vmem [shape: f32[32,32], index: 5, kind: input, shape index: {}]
  %s6 = inlined_call_operand.hbm [shape: f32[1,32], index: 6, kind: input, shape index: {}]
  %s7 = inlined_call_operand.hbm [shape: f32[1,32], index: 7, kind: input, shape index: {}]
  %s8 = inlined_call_operand.hbm [shape: f32[1,32], index: 8, kind: input, shape index: {}]
  %s9 = inlined_call_operand.hbm [shape: f32[32,64], index: 9, kind: input, shape index: {}]
  %s10 = inlined_call_operand.vmem [shape: f32[1,64], index: 10, kind: input, shape index: {}]
  %s11 = inlined_call_operand.vmem [shape: f32[64,32], index: 11, kind: input, shape index: {}]
  %s12 = inlined_call_operand.vmem [shape: f32[1,32], index: 12, kind: input, shape index: {}]
  %s13 = inlined_call_operand.vmem [shape: f32[1,32], index: 13, kind: input, shape index: {}]
  %s14 = inlined_call_operand.vmem [shape: f32[1,32], index: 14, kind: input, shape index: {}]
  %s15 = inlined_call_operand.hbm [shape: f32[2,16,32], index: 15, kind: output, shape index: {0}]
  %s16 = inlined_call_operand.hbm [shape: f32[2,2,16,16], index: 16, kind: output, shape index: {1}]
  %17 = xla_tuple %s15, %s16
  %s18 = sld [smem:[#allocation0]]
  $region125: #{tpu_custom_call.1} parent=0
    _
  %s20 = ssub.s32 1, %s18
  %s21 = scalar_select 0, %s20, %s18
  $region1: #{tpu_custom_call.1} parent=0
    #allocation5 [shape = 'u8[512]{0}', space=vmem, size = 0x400, scoped, tag = 'input window, operand 4, single buffered']
    #allocation6 [shape = 's32[2]{0}', space=sflag, size = 0x8, scoped, tag = 'scoped memory for tpu_custom_call.1']
    #allocation7 [shape = 's32[2]{0}', space=sflag, size = 0x8, scoped, tag = 'scoped memory for tpu_custom_call.1']
    #allocation8 [shape = 'u8[512]{0}', space=vmem, size = 0x400, scoped, tag = 'input window, operand 6, single buffered']
    #allocation9 [shape = 's32[1]{0}', space=sflag, size = 0x4, scoped, tag = 'scoped memory for tpu_custom_call.1']
    #allocation10 [shape = 'u8[512]{0}', space=vmem, size = 0x400, scoped, tag = 'input window, operand 7, single buffered']
    #allocation11 [shape = 'u8[512]{0}', space=vmem, size = 0x400, scoped, tag = 'input window, operand 8, single buffered']
    #allocation12 [shape = 's32[1]{0}', space=sflag, size = 0x4, scoped, tag = 'scoped memory for tpu_custom_call.1']
    #allocation13 [shape = 'u8[16384]{0}', space=vmem, size = 0x4000, scoped, tag = 'input window, operand 9, single buffered']
    #allocation14 [shape = 'u8[8192]{0}', space=vmem, size = 0x2000, scoped, tag = 'output window, operand 0']
    #allocation15 [shape = 'u8[16384]{0}', space=vmem, size = 0x4000, scoped, tag = 'output window, operand 1']
    #allocation16 [shape = 's32[2]{0}', space=sflag, size = 0x8, scoped, tag = 'scoped memory for tpu_custom_call.1']
    %22 = vsyncpa [#allocation6], 0
    %23 = vsyncpa [#allocation9], 0
    %24 = vsyncpa [#allocation12], 0
    %25 = vsyncpa [#allocation7], 0
    %s26 = scalar_lea.sflag [#allocation7], 1
    %27 = vsyncpa %s26, 0
    %28 = vsyncpa [#allocation16], 0
    %s29 = scalar_lea.sflag [#allocation16], 1
    %30 = vsyncpa %s29, 0
    loop: start=0, step=1, limit=6
    $region2: #{tpu_custom_call.1} parent=1 // loop_pre_header
      _
    $region3: #{tpu_custom_call.1} parent=1 // loop_header
      %s32 = sphi 0, %s36
      %p33 = scmp.ge.s32.totalorder %s32, 6
      %s39 = sphi 0, %s51
      %s40 = sphi 0, %s47
      %s41 = sphi 0, %s39
      %s42 = sphi 0, %s40
      %s43 = sphi 0, %s41
      %s44 = sphi 0, %s42
      %s54 = sphi 0, %s56
      %s57 = sphi 0, %s54
      %s58 = sphi 0, %s57
      %s74 = sphi 0, %s58
      %s82 = sphi 0, %s84
      %s85 = sphi 0, %s82
      %s86 = sphi 0, %s85
      %s102 = sphi 0, %s86
      %s110 = sphi 0, %s112
      %s113 = sphi 0, %s110
      %s114 = sphi 0, %s113
      %s130 = sphi 0, %s114
      %s134 = sphi 0, %s134
      %s136 = sphi 0, %s134
      %s137 = sphi 0, %s136
      %s151 = sphi 0, %s137
      %s155 = sphi 0, %s155
      %s157 = sphi 0, %s155
      %s158 = sphi 0, %s157
      %s172 = sphi 0, %s158
      %s176 = sphi 0, %s176
      %s178 = sphi 0, %s176
      %s179 = sphi 0, %s178
      %s193 = sphi 0, %s179
      %s197 = sphi 0, %s197
      %s199 = sphi 0, %s197
      %s200 = sphi 0, %s199
      %s214 = sphi 0, %s200
      %s218 = sphi 0, %s218
      %s220 = sphi 0, %s218
      %s221 = sphi 0, %s220
      %s235 = sphi 0, %s221
      %s239 = sphi 0, %s239
      %s241 = sphi 0, %s239
      %s242 = sphi 0, %s241
      %s256 = sphi 0, %s242
      %s260 = sphi 0, %s260
      %s262 = sphi 0, %s260
      %s263 = sphi 0, %s262
      %s277 = sphi 0, %s263
      %s281 = sphi 0, %s281
      %s283 = sphi 0, %s281
      %s284 = sphi 0, %s283
      %s298 = sphi 0, %s284
      %s302 = sphi 0, %s302
      %s304 = sphi 0, %s302
      %s305 = sphi 0, %s304
      %s319 = sphi 0, %s305
      %s323 = sphi 0, %s323
      %s325 = sphi 0, %s323
      %s326 = sphi 0, %s325
      %s340 = sphi 0, %s326
      %s344 = sphi 0, %s344
      %s346 = sphi 0, %s344
      %s347 = sphi 0, %s346
      %s361 = sphi 0, %s347
      %s365 = sphi 0, %s365
      %s367 = sphi 0, %s365
      %s368 = sphi 0, %s367
      %s382 = sphi 0, %s368
      %s390 = sphi 0, %s392
      %s393 = sphi 0, %s390
      %s394 = sphi 0, %s393
      %s410 = sphi 0, %s394
      %s418 = sphi 0, %s420
      %s421 = sphi 0, %s418
      %s422 = sphi 0, %s421
      %s438 = sphi 0, %s422
    $region4: #{tpu_custom_call.1} parent=1 // loop_header_branch
      %35 = sbr.rel (%p33) target = $region8
    $region5: #{tpu_custom_call.1} parent=1 // loop_body
      %s37 = ssub.s32 %s32, 1
      %s38 = ssub.s32 %s32, 2
      %s45 = sadd.s32 1, %s40
      %p46 = scmp.ge.s32.totalorder %s45, 2
      %s47 = scalar_select %p46, 0, %s45
      %s48 = sadd.s32 1, %s39
      %s49 = scalar_select %p46, %s48, %s39
      %p50 = scmp.ge.s32.totalorder %s49, 2
      %s51 = scalar_select %p50, 0, %s49
      %s52 = ssub.s32 %s39, %s51
      %p53 = scmp.eq.s32.totalorder %s52, 0
      %s55 = sadd.s32 %s54, 1
      %s56 = scalar_select %p53, %s54, %s55
      %p59 = pneg %p53
      %p60 = scmp.eq.s32.totalorder %s32, 3
      %p61 = por %p59, %p60
      %p62 = scmp.ne.s32.totalorder %s54, %s57
      %p63 = scmp.eq.s32.totalorder %s32, 0
      %p64 = por %p62, %p63
      %p65 = scmp.ne.s32.totalorder %s54, %s57
      %p66 = scmp.eq.s32.totalorder %s37, 3
      %p67 = por %p65, %p66
      %p68 = scmp.ne.s32.totalorder %s57, %s58
      %p69 = scmp.eq.s32.totalorder %s37, 0
      %p70 = por %p68, %p69
      %p71 = scmp.ne.s32.totalorder %s57, %s58
      %p72 = scmp.eq.s32.totalorder %s38, 3
      %p73 = por %p71, %p72
      %p75 = scmp.ne.s32.totalorder %s58, %s74
      %p76 = scmp.eq.s32.totalorder %s38, 0
      %p77 = por %p75, %p76
      %s78 = ssub.s32 %s39, %s51
      %s79 = ssub.s32 %s40, %s47
      %s80 = sor.u32 %s78, %s79
      %p81 = scmp.eq.s32.totalorder %s80, 0
      %s83 = sadd.s32 %s82, 1
      %s84 = scalar_select %p81, %s82, %s83
      %p87 = pneg %p81
      %p88 = scmp.eq.s32.totalorder %s32, 3
      %p89 = por %p87, %p88
      %p90 = scmp.ne.s32.totalorder %s82, %s85
      %p91 = scmp.eq.s32.totalorder %s32, 0
      %p92 = por %p90, %p91
      %p93 = scmp.ne.s32.totalorder %s82, %s85
      %p94 = scmp.eq.s32.totalorder %s37, 3
      %p95 = por %p93, %p94
      %p96 = scmp.ne.s32.totalorder %s85, %s86
      %p97 = scmp.eq.s32.totalorder %s37, 0
      %p98 = por %p96, %p97
      %p99 = scmp.ne.s32.totalorder %s85, %s86
      %p100 = scmp.eq.s32.totalorder %s38, 3
      %p101 = por %p99, %p100
      %p103 = scmp.ne.s32.totalorder %s86, %s102
      %p104 = scmp.eq.s32.totalorder %s38, 0
      %p105 = por %p103, %p104
      %s106 = ssub.s32 %s39, %s51
      %s107 = ssub.s32 %s40, %s47
      %s108 = sor.u32 %s106, %s107
      %p109 = scmp.eq.s32.totalorder %s108, 0
      %s111 = sadd.s32 %s110, 1
      %s112 = scalar_select %p109, %s110, %s111
      %p115 = pneg %p109
      %p116 = scmp.eq.s32.totalorder %s32, 3
      %p117 = por %p115, %p116
      %p118 = scmp.ne.s32.totalorder %s110, %s113
      %p119 = scmp.eq.s32.totalorder %s32, 0
      %p120 = por %p118, %p119
      %p121 = scmp.ne.s32.totalorder %s110, %s113
      %p122 = scmp.eq.s32.totalorder %s37, 3
      %p123 = por %p121, %p122
      %p124 = scmp.ne.s32.totalorder %s113, %s114
      %p125 = scmp.eq.s32.totalorder %s37, 0
      %p126 = por %p124, %p125
      %p127 = scmp.ne.s32.totalorder %s113, %s114
      %p128 = scmp.eq.s32.totalorder %s38, 3
      %p129 = por %p127, %p128
      %p131 = scmp.ne.s32.totalorder %s114, %s130
      %p132 = scmp.eq.s32.totalorder %s38, 0
      %p133 = por %p131, %p132
      %s135 = sadd.s32 %s134, 1
      %p138 = scmp.eq.s32.totalorder %s32, 3
      %p139 = scmp.ne.s32.totalorder %s134, %s136
      %p140 = scmp.eq.s32.totalorder %s32, 0
      %p141 = por %p139, %p140
      %p142 = scmp.ne.s32.totalorder %s134, %s136
      %p143 = scmp.eq.s32.totalorder %s37, 3
      %p144 = por %p142, %p143
      %p145 = scmp.ne.s32.totalorder %s136, %s137
      %p146 = scmp.eq.s32.totalorder %s37, 0
      %p147 = por %p145, %p146
      %p148 = scmp.ne.s32.totalorder %s136, %s137
      %p149 = scmp.eq.s32.totalorder %s38, 3
      %p150 = por %p148, %p149
      %p152 = scmp.ne.s32.totalorder %s137, %s151
      %p153 = scmp.eq.s32.totalorder %s38, 0
      %p154 = por %p152, %p153
      %s156 = sadd.s32 %s155, 1
      %p159 = scmp.eq.s32.totalorder %s32, 3
      %p160 = scmp.ne.s32.totalorder %s155, %s157
      %p161 = scmp.eq.s32.totalorder %s32, 0
      %p162 = por %p160, %p161
      %p163 = scmp.ne.s32.totalorder %s155, %s157
      %p164 = scmp.eq.s32.totalorder %s37, 3
      %p165 = por %p163, %p164
      %p166 = scmp.ne.s32.totalorder %s157, %s158
      %p167 = scmp.eq.s32.totalorder %s37, 0
      %p168 = por %p166, %p167
      %p169 = scmp.ne.s32.totalorder %s157, %s158
      %p170 = scmp.eq.s32.totalorder %s38, 3
      %p171 = por %p169, %p170
      %p173 = scmp.ne.s32.totalorder %s158, %s172
      %p174 = scmp.eq.s32.totalorder %s38, 0
      %p175 = por %p173, %p174
      %s177 = sadd.s32 %s176, 1
      %p180 = scmp.eq.s32.totalorder %s32, 3
      %p181 = scmp.ne.s32.totalorder %s176, %s178
      %p182 = scmp.eq.s32.totalorder %s32, 0
      %p183 = por %p181, %p182
      %p184 = scmp.ne.s32.totalorder %s176, %s178
      %p185 = scmp.eq.s32.totalorder %s37, 3
      %p186 = por %p184, %p185
      %p187 = scmp.ne.s32.totalorder %s178, %s179
      %p188 = scmp.eq.s32.totalorder %s37, 0
      %p189 = por %p187, %p188
      %p190 = scmp.ne.s32.totalorder %s178, %s179
      %p191 = scmp.eq.s32.totalorder %s38, 3
      %p192 = por %p190, %p191
      %p194 = scmp.ne.s32.totalorder %s179, %s193
      %p195 = scmp.eq.s32.totalorder %s38, 0
      %p196 = por %p194, %p195
      %s198 = sadd.s32 %s197, 1
      %p201 = scmp.eq.s32.totalorder %s32, 3
      %p202 = scmp.ne.s32.totalorder %s197, %s199
      %p203 = scmp.eq.s32.totalorder %s32, 0
      %p204 = por %p202, %p203
      %p205 = scmp.ne.s32.totalorder %s197, %s199
      %p206 = scmp.eq.s32.totalorder %s37, 3
      %p207 = por %p205, %p206
      %p208 = scmp.ne.s32.totalorder %s199, %s200
      %p209 = scmp.eq.s32.totalorder %s37, 0
      %p210 = por %p208, %p209
      %p211 = scmp.ne.s32.totalorder %s199, %s200
      %p212 = scmp.eq.s32.totalorder %s38, 3
      %p213 = por %p211, %p212
      %p215 = scmp.ne.s32.totalorder %s200, %s214
      %p216 = scmp.eq.s32.totalorder %s38, 0
      %p217 = por %p215, %p216
      %s219 = sadd.s32 %s218, 1
      %p222 = scmp.eq.s32.totalorder %s32, 3
      %p223 = scmp.ne.s32.totalorder %s218, %s220
      %p224 = scmp.eq.s32.totalorder %s32, 0
      %p225 = por %p223, %p224
      %p226 = scmp.ne.s32.totalorder %s218, %s220
      %p227 = scmp.eq.s32.totalorder %s37, 3
      %p228 = por %p226, %p227
      %p229 = scmp.ne.s32.totalorder %s220, %s221
      %p230 = scmp.eq.s32.totalorder %s37, 0
      %p231 = por %p229, %p230
      %p232 = scmp.ne.s32.totalorder %s220, %s221
      %p233 = scmp.eq.s32.totalorder %s38, 3
      %p234 = por %p232, %p233
      %p236 = scmp.ne.s32.totalorder %s221, %s235
      %p237 = scmp.eq.s32.totalorder %s38, 0
      %p238 = por %p236, %p237
      %s240 = sadd.s32 %s239, 1
      %p243 = scmp.eq.s32.totalorder %s32, 3
      %p244 = scmp.ne.s32.totalorder %s239, %s241
      %p245 = scmp.eq.s32.totalorder %s32, 0
      %p246 = por %p244, %p245
      %p247 = scmp.ne.s32.totalorder %s239, %s241
      %p248 = scmp.eq.s32.totalorder %s37, 3
      %p249 = por %p247, %p248
      %p250 = scmp.ne.s32.totalorder %s241, %s242
      %p251 = scmp.eq.s32.totalorder %s37, 0
      %p252 = por %p250, %p251
      %p253 = scmp.ne.s32.totalorder %s241, %s242
      %p254 = scmp.eq.s32.totalorder %s38, 3
      %p255 = por %p253, %p254
      %p257 = scmp.ne.s32.totalorder %s242, %s256
      %p258 = scmp.eq.s32.totalorder %s38, 0
      %p259 = por %p257, %p258
      %s261 = sadd.s32 %s260, 1
      %p264 = scmp.eq.s32.totalorder %s32, 3
      %p265 = scmp.ne.s32.totalorder %s260, %s262
      %p266 = scmp.eq.s32.totalorder %s32, 0
      %p267 = por %p265, %p266
      %p268 = scmp.ne.s32.totalorder %s260, %s262
      %p269 = scmp.eq.s32.totalorder %s37, 3
      %p270 = por %p268, %p269
      %p271 = scmp.ne.s32.totalorder %s262, %s263
      %p272 = scmp.eq.s32.totalorder %s37, 0
      %p273 = por %p271, %p272
      %p274 = scmp.ne.s32.totalorder %s262, %s263
      %p275 = scmp.eq.s32.totalorder %s38, 3
      %p276 = por %p274, %p275
      %p278 = scmp.ne.s32.totalorder %s263, %s277
      %p279 = scmp.eq.s32.totalorder %s38, 0
      %p280 = por %p278, %p279
      %s282 = sadd.s32 %s281, 1
      %p285 = scmp.eq.s32.totalorder %s32, 3
      %p286 = scmp.ne.s32.totalorder %s281, %s283
      %p287 = scmp.eq.s32.totalorder %s32, 0
      %p288 = por %p286, %p287
      %p289 = scmp.ne.s32.totalorder %s281, %s283
      %p290 = scmp.eq.s32.totalorder %s37, 3
      %p291 = por %p289, %p290
      %p292 = scmp.ne.s32.totalorder %s283, %s284
      %p293 = scmp.eq.s32.totalorder %s37, 0
      %p294 = por %p292, %p293
      %p295 = scmp.ne.s32.totalorder %s283, %s284
      %p296 = scmp.eq.s32.totalorder %s38, 3
      %p297 = por %p295, %p296
      %p299 = scmp.ne.s32.totalorder %s284, %s298
      %p300 = scmp.eq.s32.totalorder %s38, 0
      %p301 = por %p299, %p300
      %s303 = sadd.s32 %s302, 1
      %p306 = scmp.eq.s32.totalorder %s32, 3
      %p307 = scmp.ne.s32.totalorder %s302, %s304
      %p308 = scmp.eq.s32.totalorder %s32, 0
      %p309 = por %p307, %p308
      %p310 = scmp.ne.s32.totalorder %s302, %s304
      %p311 = scmp.eq.s32.totalorder %s37, 3
      %p312 = por %p310, %p311
      %p313 = scmp.ne.s32.totalorder %s304, %s305
      %p314 = scmp.eq.s32.totalorder %s37, 0
      %p315 = por %p313, %p314
      %p316 = scmp.ne.s32.totalorder %s304, %s305
      %p317 = scmp.eq.s32.totalorder %s38, 3
      %p318 = por %p316, %p317
      %p320 = scmp.ne.s32.totalorder %s305, %s319
      %p321 = scmp.eq.s32.totalorder %s38, 0
      %p322 = por %p320, %p321
      %s324 = sadd.s32 %s323, 1
      %p327 = scmp.eq.s32.totalorder %s32, 3
      %p328 = scmp.ne.s32.totalorder %s323, %s325
      %p329 = scmp.eq.s32.totalorder %s32, 0
      %p330 = por %p328, %p329
      %p331 = scmp.ne.s32.totalorder %s323, %s325
      %p332 = scmp.eq.s32.totalorder %s37, 3
      %p333 = por %p331, %p332
      %p334 = scmp.ne.s32.totalorder %s325, %s326
      %p335 = scmp.eq.s32.totalorder %s37, 0
      %p336 = por %p334, %p335
      %p337 = scmp.ne.s32.totalorder %s325, %s326
      %p338 = scmp.eq.s32.totalorder %s38, 3
      %p339 = por %p337, %p338
      %p341 = scmp.ne.s32.totalorder %s326, %s340
      %p342 = scmp.eq.s32.totalorder %s38, 0
      %p343 = por %p341, %p342
      %s345 = sadd.s32 %s344, 1
      %p348 = scmp.eq.s32.totalorder %s32, 3
      %p349 = scmp.ne.s32.totalorder %s344, %s346
      %p350 = scmp.eq.s32.totalorder %s32, 0
      %p351 = por %p349, %p350
      %p352 = scmp.ne.s32.totalorder %s344, %s346
      %p353 = scmp.eq.s32.totalorder %s37, 3
      %p354 = por %p352, %p353
      %p355 = scmp.ne.s32.totalorder %s346, %s347
      %p356 = scmp.eq.s32.totalorder %s37, 0
      %p357 = por %p355, %p356
      %p358 = scmp.ne.s32.totalorder %s346, %s347
      %p359 = scmp.eq.s32.totalorder %s38, 3
      %p360 = por %p358, %p359
      %p362 = scmp.ne.s32.totalorder %s347, %s361
      %p363 = scmp.eq.s32.totalorder %s38, 0
      %p364 = por %p362, %p363
      %s366 = sadd.s32 %s365, 1
      %p369 = scmp.eq.s32.totalorder %s32, 3
      %p370 = scmp.ne.s32.totalorder %s365, %s367
      %p371 = scmp.eq.s32.totalorder %s32, 0
      %p372 = por %p370, %p371
      %p373 = scmp.ne.s32.totalorder %s365, %s367
      %p374 = scmp.eq.s32.totalorder %s37, 3
      %p375 = por %p373, %p374
      %p376 = scmp.ne.s32.totalorder %s367, %s368
      %p377 = scmp.eq.s32.totalorder %s37, 0
      %p378 = por %p376, %p377
      %p379 = scmp.ne.s32.totalorder %s367, %s368
      %p380 = scmp.eq.s32.totalorder %s38, 3
      %p381 = por %p379, %p380
      %p383 = scmp.ne.s32.totalorder %s368, %s382
      %p384 = scmp.eq.s32.totalorder %s38, 0
      %p385 = por %p383, %p384
      %s386 = ssub.s32 %s39, %s51
      %s387 = ssub.s32 %s40, %s47
      %s388 = sor.u32 %s386, %s387
      %p389 = scmp.eq.s32.totalorder %s388, 0
      %s391 = sadd.s32 %s390, 1
      %s392 = scalar_select %p389, %s390, %s391
      %p395 = pneg %p389
      %p396 = scmp.eq.s32.totalorder %s32, 3
      %p397 = por %p395, %p396
      %p398 = scmp.ne.s32.totalorder %s390, %s393
      %p399 = scmp.eq.s32.totalorder %s32, 0
      %p400 = por %p398, %p399
      %p401 = scmp.ne.s32.totalorder %s390, %s393
      %p402 = scmp.eq.s32.totalorder %s37, 3
      %p403 = por %p401, %p402
      %p404 = scmp.ne.s32.totalorder %s393, %s394
      %p405 = scmp.eq.s32.totalorder %s37, 0
      %p406 = por %p404, %p405
      %p407 = scmp.ne.s32.totalorder %s393, %s394
      %p408 = scmp.eq.s32.totalorder %s38, 3
      %p409 = por %p407, %p408
      %p411 = scmp.ne.s32.totalorder %s394, %s410
      %p412 = scmp.eq.s32.totalorder %s38, 0
      %p413 = por %p411, %p412
      %s414 = ssub.s32 %s39, %s51
      %s415 = ssub.s32 %s40, %s47
      %s416 = sor.u32 %s414, %s415
      %p417 = scmp.eq.s32.totalorder %s416, 0
      %s419 = sadd.s32 %s418, 1
      %s420 = scalar_select %p417, %s418, %s419
      %p423 = pneg %p417
      %p424 = scmp.eq.s32.totalorder %s32, 3
      %p425 = por %p423, %p424
      %p426 = scmp.ne.s32.totalorder %s418, %s421
      %p427 = scmp.eq.s32.totalorder %s32, 0
      %p428 = por %p426, %p427
      %p429 = scmp.ne.s32.totalorder %s418, %s421
      %p430 = scmp.eq.s32.totalorder %s37, 3
      %p431 = por %p429, %p430
      %p432 = scmp.ne.s32.totalorder %s421, %s422
      %p433 = scmp.eq.s32.totalorder %s37, 0
      %p434 = por %p432, %p433
      %p435 = scmp.ne.s32.totalorder %s421, %s422
      %p436 = scmp.eq.s32.totalorder %s38, 3
      %p437 = por %p435, %p436
      %p439 = scmp.ne.s32.totalorder %s422, %s438
      %p440 = scmp.eq.s32.totalorder %s38, 0
      %p441 = por %p439, %p440
      %p442 = scmp.le.s32.totalorder 1, %s32
      %p443 = scmp.lt.s32.totalorder %s32, 5
      %p444 = pnand %p442, %p443
      %p445 = pneg %p444
      // Predicated region
      $region9: #{tpu_custom_call.1} parent=5 // pred_check
        _
      $region10: #{tpu_custom_call.1} parent=5 // pred_check_branch
        %447 = sbr.rel (%p444) target = $region12
      $region11: #{tpu_custom_call.1} parent=5 // pred_region
        %s448 = ssub.s32 %s32, 1
        // Predicated region
        $region13: #{tpu_custom_call.1} parent=11 // pred_check
          %p449 = pneg %p147
        $region14: #{tpu_custom_call.1} parent=11 // pred_check_branch
          %451 = sbr.rel (%p449) target = $region16
        $region15: #{tpu_custom_call.1} parent=11 // pred_region
          _
        $region16: #{tpu_custom_call.1} parent=11 // pred_fallthru
          _
        // Predicated region
        $region17: #{tpu_custom_call.1} parent=11 // pred_check
          %p452 = pneg %p168
        $region18: #{tpu_custom_call.1} parent=11 // pred_check_branch
          %454 = sbr.rel (%p452) target = $region20
        $region19: #{tpu_custom_call.1} parent=11 // pred_region
          %s456 = ssub.s32 16, 16
          %457 = vsyncadd [#allocation6], %s456
          %s459 = sshll.u32 [#allocation5], 4
          %s460 = int_to_ptr.vmem [resolvable:$true] %s459
          %462 = dma.hbm_to_vmem [thread:$0]  %s4, 16, %s460, [#allocation6]
        $region20: #{tpu_custom_call.1} parent=11 // pred_fallthru
          _
        // Predicated region
        $region21: #{tpu_custom_call.1} parent=11 // pred_check
          %p463 = pneg %p189
        $region22: #{tpu_custom_call.1} parent=11 // pred_check_branch
          %465 = sbr.rel (%p463) target = $region24
        $region23: #{tpu_custom_call.1} parent=11 // pred_region
          _
        $region24: #{tpu_custom_call.1} parent=11 // pred_fallthru
          _
        // Predicated region
        $region25: #{tpu_custom_call.1} parent=11 // pred_check
          %p466 = pneg %p210
        $region26: #{tpu_custom_call.1} parent=11 // pred_check_branch
          %468 = sbr.rel (%p466) target = $region28
        $region27: #{tpu_custom_call.1} parent=11 // pred_region
          %s470 = ssub.s32 16, 16
          %471 = vsyncadd [#allocation9], %s470
          %s473 = sshll.u32 [#allocation8], 4
          %s474 = int_to_ptr.vmem [resolvable:$true] %s473
          %476 = dma.hbm_to_vmem [thread:$0]  %s6, 16, %s474, [#allocation9]
        $region28: #{tpu_custom_call.1} parent=11 // pred_fallthru
          _
        // Predicated region
        $region29: #{tpu_custom_call.1} parent=11 // pred_check
          %p477 = pneg %p231
        $region30: #{tpu_custom_call.1} parent=11 // pred_check_branch
          %479 = sbr.rel (%p477) target = $region32
        $region31: #{tpu_custom_call.1} parent=11 // pred_region
          %s481 = ssub.s32 16, 16
          %482 = vsyncadd [#allocation9], %s481
          %s484 = sshll.u32 [#allocation10], 4
          %s485 = int_to_ptr.vmem [resolvable:$true] %s484
          %487 = dma.hbm_to_vmem [thread:$0]  %s7, 16, %s485, [#allocation9]
        $region32: #{tpu_custom_call.1} parent=11 // pred_fallthru
          _
        // Predicated region
        $region33: #{tpu_custom_call.1} parent=11 // pred_check
          %p488 = pneg %p252
        $region34: #{tpu_custom_call.1} parent=11 // pred_check_branch
          %490 = sbr.rel (%p488) target = $region36
        $region35: #{tpu_custom_call.1} parent=11 // pred_region
          %s492 = ssub.s32 16, 16
          %493 = vsyncadd [#allocation12], %s492
          %s495 = sshll.u32 [#allocation11], 4
          %s496 = int_to_ptr.vmem [resolvable:$true] %s495
          %498 = dma.hbm_to_vmem [thread:$0]  %s8, 16, %s496, [#allocation12]
        $region36: #{tpu_custom_call.1} parent=11 // pred_fallthru
          _
        // Predicated region
        $region37: #{tpu_custom_call.1} parent=11 // pred_check
          %p499 = pneg %p273
        $region38: #{tpu_custom_call.1} parent=11 // pred_check_branch
          %501 = sbr.rel (%p499) target = $region40
        $region39: #{tpu_custom_call.1} parent=11 // pred_region
          %s503 = ssub.s32 512, 512
          %504 = vsyncadd [#allocation12], %s503
          %s505 = sshll.u32 [#allocation13], 4
          %s506 = int_to_ptr.vmem [resolvable:$true] %s505
          %511 = dma.hbm_to_vmem [thread:$0]  %s9, 512, %s506, [#allocation12], 128, 128, 8
        $region40: #{tpu_custom_call.1} parent=11 // pred_fallthru
          _
        // Predicated region
        $region41: #{tpu_custom_call.1} parent=11 // pred_check
          %p512 = pneg %p294
        $region42: #{tpu_custom_call.1} parent=11 // pred_check_branch
          %514 = sbr.rel (%p512) target = $region44
        $region43: #{tpu_custom_call.1} parent=11 // pred_region
          _
        $region44: #{tpu_custom_call.1} parent=11 // pred_fallthru
          _
        // Predicated region
        $region45: #{tpu_custom_call.1} parent=11 // pred_check
          %p515 = pneg %p315
        $region46: #{tpu_custom_call.1} parent=11 // pred_check_branch
          %517 = sbr.rel (%p515) target = $region48
        $region47: #{tpu_custom_call.1} parent=11 // pred_region
          _
        $region48: #{tpu_custom_call.1} parent=11 // pred_fallthru
          _
        // Predicated region
        $region49: #{tpu_custom_call.1} parent=11 // pred_check
          %p518 = pneg %p336
        $region50: #{tpu_custom_call.1} parent=11 // pred_check_branch
          %520 = sbr.rel (%p518) target = $region52
        $region51: #{tpu_custom_call.1} parent=11 // pred_region
          _
        $region52: #{tpu_custom_call.1} parent=11 // pred_fallthru
          _
        // Predicated region
        $region53: #{tpu_custom_call.1} parent=11 // pred_check
          %p521 = pneg %p357
        $region54: #{tpu_custom_call.1} parent=11 // pred_check_branch
          %523 = sbr.rel (%p521) target = $region56
        $region55: #{tpu_custom_call.1} parent=11 // pred_region
          _
        $region56: #{tpu_custom_call.1} parent=11 // pred_fallthru
          _
        // Predicated region
        $region57: #{tpu_custom_call.1} parent=11 // pred_check
          %p524 = pneg %p378
        $region58: #{tpu_custom_call.1} parent=11 // pred_check_branch
          %526 = sbr.rel (%p524) target = $region60
        $region59: #{tpu_custom_call.1} parent=11 // pred_region
          _
        $region60: #{tpu_custom_call.1} parent=11 // pred_fallthru
          _
      $region12: #{tpu_custom_call.1} parent=5 // pred_fallthru
        _
      %p527 = scmp.lt.s32.totalorder %s32, 4
      // Predicated region
      $region61: #{tpu_custom_call.1} parent=5 // pred_check
        %p528 = pneg %p527
      $region62: #{tpu_custom_call.1} parent=5 // pred_check_branch
        %530 = sbr.rel (%p528) target = $region64
      $region63: #{tpu_custom_call.1} parent=5 // pred_region
        // Predicated region
        $region65: #{tpu_custom_call.1} parent=63 // pred_check
          %p531 = pneg %p64
        $region66: #{tpu_custom_call.1} parent=63 // pred_check_branch
          %533 = sbr.rel (%p531) target = $region68
        $region67: #{tpu_custom_call.1} parent=63 // pred_region
          %p534 = scmp.lt.s32.totalorder %s39, 1
          %s535 = scalar_select %p534, %s39, 1
          %s536 = smul.addr %s535, 2
          %s537 = smul.addr %s536, 8
          %s538 = scalar_lea.vmem %s0, %s537
        $region68: #{tpu_custom_call.1} parent=63 // pred_fallthru
          _
        // Predicated region
        $region69: #{tpu_custom_call.1} parent=63 // pred_check
          %p539 = pneg %p92
        $region70: #{tpu_custom_call.1} parent=63 // pred_check_branch
          %541 = sbr.rel (%p539) target = $region72
        $region71: #{tpu_custom_call.1} parent=63 // pred_region
          %p542 = scmp.lt.s32.totalorder %s39, 1
          %s543 = scalar_select %p542, %s39, 1
          %p544 = scmp.lt.s32.totalorder %s40, 1
          %s545 = scalar_select %p544, %s40, 1
          %s546 = smul.addr %s543, 2
          %s547 = sadd.s32 %s545, %s546
          %s548 = smul.addr %s547, 8
          %s549 = scalar_lea.vmem %s1, %s548
        $region72: #{tpu_custom_call.1} parent=63 // pred_fallthru
          _
        // Predicated region
        $region73: #{tpu_custom_call.1} parent=63 // pred_check
          %p550 = pneg %p120
        $region74: #{tpu_custom_call.1} parent=63 // pred_check_branch
          %552 = sbr.rel (%p550) target = $region76
        $region75: #{tpu_custom_call.1} parent=63 // pred_region
          %p553 = scmp.lt.s32.totalorder %s39, 1
          %s554 = scalar_select %p553, %s39, 1
          %p555 = scmp.lt.s32.totalorder %s40, 1
          %s556 = scalar_select %p555, %s40, 1
          %s557 = smul.addr %s554, 2
          %s558 = sadd.s32 %s556, %s557
          %s559 = smul.addr %s558, 8
          %s560 = scalar_lea.vmem %s2, %s559
        $region76: #{tpu_custom_call.1} parent=63 // pred_fallthru
          _
      $region64: #{tpu_custom_call.1} parent=5 // pred_fallthru
        _
      %p561 = scmp.le.s32.totalorder 1, %s32
      %p562 = scmp.lt.s32.totalorder %s32, 5
      %p563 = pnand %p561, %p562
      %p564 = pneg %p563
      // Predicated region
      $region77: #{tpu_custom_call.1} parent=5 // pred_check
        _
      $region78: #{tpu_custom_call.1} parent=5 // pred_check_branch
        %566 = sbr.rel (%p563) target = $region80
      $region79: #{tpu_custom_call.1} parent=5 // pred_region
        %s567 = ssub.s32 %s32, 1
        // Predicated region
        $region81: #{tpu_custom_call.1} parent=79 // pred_check
          %p568 = pneg %p168
        $region82: #{tpu_custom_call.1} parent=79 // pred_check_branch
          %570 = sbr.rel (%p568) target = $region84
        $region83: #{tpu_custom_call.1} parent=79 // pred_region
          %571 = dma.done [#allocation6], 16
        $region84: #{tpu_custom_call.1} parent=79 // pred_fallthru
          _
        // Predicated region
        $region85: #{tpu_custom_call.1} parent=79 // pred_check
          %p572 = pneg %p210
        $region86: #{tpu_custom_call.1} parent=79 // pred_check_branch
          %574 = sbr.rel (%p572) target = $region88
        $region87: #{tpu_custom_call.1} parent=79 // pred_region
          %575 = dma.done [#allocation9], 16
        $region88: #{tpu_custom_call.1} parent=79 // pred_fallthru
          _
        // Predicated region
        $region89: #{tpu_custom_call.1} parent=79 // pred_check
          %p576 = pneg %p231
        $region90: #{tpu_custom_call.1} parent=79 // pred_check_branch
          %578 = sbr.rel (%p576) target = $region92
        $region91: #{tpu_custom_call.1} parent=79 // pred_region
          %579 = dma.done [#allocation9], 16
        $region92: #{tpu_custom_call.1} parent=79 // pred_fallthru
          _
        // Predicated region
        $region93: #{tpu_custom_call.1} parent=79 // pred_check
          %p580 = pneg %p252
        $region94: #{tpu_custom_call.1} parent=79 // pred_check_branch
          %582 = sbr.rel (%p580) target = $region96
        $region95: #{tpu_custom_call.1} parent=79 // pred_region
          %583 = dma.done [#allocation12], 16
        $region96: #{tpu_custom_call.1} parent=79 // pred_fallthru
          _
        // Predicated region
        $region97: #{tpu_custom_call.1} parent=79 // pred_check
          %p584 = pneg %p273
        $region98: #{tpu_custom_call.1} parent=79 // pred_check_branch
          %586 = sbr.rel (%p584) target = $region100
        $region99: #{tpu_custom_call.1} parent=79 // pred_region
          %587 = dma.done [#allocation12], 512
        $region100: #{tpu_custom_call.1} parent=79 // pred_fallthru
          _
        %p588 = scmp.lt.s32.totalorder %s41, 1
        %s589 = scalar_select %p588, %s41, 1
        %s590 = smul.addr %s589, 2
        %s591 = smul.addr %s590, 8
        %s592 = scalar_lea.vmem %s0, %s591
        %p593 = pneg %p70
        %p594 = pneg %p67
        %p595 = scmp.lt.s32.totalorder %s41, 1
        %s596 = scalar_select %p595, %s41, 1
        %p597 = scmp.lt.s32.totalorder %s42, 1
        %s598 = scalar_select %p597, %s42, 1
        %s599 = smul.addr %s596, 2
        %s600 = sadd.s32 %s598, %s599
        %s601 = smul.addr %s600, 8
        %s602 = scalar_lea.vmem %s1, %s601
        %p603 = pneg %p98
        %p604 = pneg %p95
        %p605 = scmp.lt.s32.totalorder %s41, 1
        %s606 = scalar_select %p605, %s41, 1
        %p607 = scmp.lt.s32.totalorder %s42, 1
        %s608 = scalar_select %p607, %s42, 1
        %s609 = smul.addr %s606, 2
        %s610 = sadd.s32 %s608, %s609
        %s611 = smul.addr %s610, 8
        %s612 = scalar_lea.vmem %s2, %s611
        %p613 = pneg %p126
        %p614 = pneg %p123
        %p615 = pneg %p147
        %p616 = pneg %p144
        %p617 = pneg %p168
        %p618 = pneg %p165
        %p619 = pneg %p189
        %p620 = pneg %p186
        %p621 = pneg %p210
        %p622 = pneg %p207
        %p623 = pneg %p231
        %p624 = pneg %p228
        %p625 = pneg %p252
        %p626 = pneg %p249
        %p627 = pneg %p273
        %p628 = pneg %p270
        %p629 = pneg %p294
        %p630 = pneg %p291
        %p631 = pneg %p315
        %p632 = pneg %p312
        %p633 = pneg %p336
        %p634 = pneg %p333
        %p635 = pneg %p357
        %p636 = pneg %p354
        %p637 = pneg %p378
        %p638 = pneg %p375
        %p639 = pneg %p406
        %p640 = pneg %p403
        %s641 = sand.u32 %s393, 1
        %s642 = scalar_lea.sflag [#allocation7], %s641
        %s643 = sand.u32 %s393, 1
        %s644 = smul.addr %s643, 8
        %s645 = scalar_lea.vmem [#allocation14], %s644
        %p646 = pneg %p434
        %p647 = pneg %p431
        %s648 = sand.u32 %s421, 1
        %s649 = scalar_lea.sflag [#allocation16], %s648
        %s650 = sand.u32 %s421, 1
        %s651 = smul.addr %s650, 16
        %s652 = scalar_lea.vmem [#allocation15], %s651
        %p653 = scmp.lt.s32.totalorder %s41, 1
        %s654 = scalar_select %p653, %s41, 1
        %s655 = smul.addr %s654, 2
        %s656 = smul.addr %s655, 8
        %s657 = scalar_lea.vmem %s0, %s656
        %p658 = scmp.lt.s32.totalorder %s41, 1
        %s659 = scalar_select %p658, %s41, 1
        %p660 = scmp.lt.s32.totalorder %s42, 1
        %s661 = scalar_select %p660, %s42, 1
        %s662 = smul.addr %s659, 2
        %s663 = sadd.s32 %s661, %s662
        %s664 = smul.addr %s663, 8
        %s665 = scalar_lea.vmem %s1, %s664
        %p666 = scmp.lt.s32.totalorder %s41, 1
        %s667 = scalar_select %p666, %s41, 1
        %p668 = scmp.lt.s32.totalorder %s42, 1
        %s669 = scalar_select %p668, %s42, 1
        %s670 = smul.addr %s667, 2
        %s671 = sadd.s32 %s669, %s670
        %s672 = smul.addr %s671, 8
        %s673 = scalar_lea.vmem %s2, %s672
        %p674 = scmp.eq.s32.totalorder %s42, 0
        // Predicated region
        $region101: #{tpu_custom_call.1} parent=79 // pred_check
          %p675 = pneg %p674
        $region102: #{tpu_custom_call.1} parent=79 // pred_check_branch
          %677 = sbr.rel (%p675) target = $region104
        $region103: #{tpu_custom_call.1} parent=79 // pred_region
          %v678 = vld [vmem:[%s657] sm:$0xff]
          %v679 = vld [vmem:[%s657 + $0x8] sm:$0xff]
          %v680 = vld [vmem:[%s3] sm:$0xff]
          %v681 = vld [vmem:[%s3 + $0x8] sm:$0xff]
          %v682 = vld [vmem:[%s3 + $0x10] sm:$0xff]
          %v683 = vld [vmem:[%s3 + $0x18] sm:$0xff]
          %v684 = vld [vmem:[#allocation5] sm:$0x1]
          %v686 = vlaneseq
          %v687 = vshrl.u32 %v686, 7
          %v688 = vsub.s32 0, %v687
          %v689 = vrot.slane %v684, %v688
          %vm691 = vcmask 261120
          %v693 = vsel %vm691, %v678, 0
          %v696 = vsel %vm691, %v679, 0
          %698 = vmatprep.subr.mxu0 0.0
          %699 = vmatpush1.msra.mxu0 %v680
          %700 = vmatprep.subr.mxu0 0.0
          %701 = vmatpush1.msra.mxu0 %v681
          %702 = vmatprep.subr.mxu0 0.0
          %703 = vmatpush1.msra.mxu0 %v682
          %704 = vmatprep.subr.mxu0 0.0
          %705 = vmatpush1.msra.mxu0 %v683
          %706 = vmatprep.subr.mxu0 0.0
          %707 = vmatpush1.msra.mxu0 0.0
          %708 = vmatprep.subr.mxu0 0.0
          %709 = vmatpush1.msra.mxu0 0.0
          %710 = vmatprep.subr.mxu0 0.0
          %711 = vmatpush1.msra.mxu0 0.0
          %712 = vmatprep.subr.mxu0 0.0
          %713 = vmatpush1.msra.mxu0 0.0
          %714 = vmatprep.subr.mxu0 0.0
          %715 = vmatpush1.msra.mxu0 0.0
          %716 = vmatprep.subr.mxu0 0.0
          %717 = vmatpush1.msra.mxu0 0.0
          %718 = vmatprep.subr.mxu0 0.0
          %719 = vmatpush1.msra.mxu0 0.0
          %720 = vmatprep.subr.mxu0 0.0
          %721 = vmatpush1.msra.mxu0 0.0
          %722 = vmatprep.subr.mxu0 0.0
          %723 = vmatpush1.msra.mxu0 0.0
          %724 = vmatprep.subr.mxu0 0.0
          %725 = vmatpush1.msra.mxu0 0.0
          %726 = vmatprep.subr.mxu0 0.0
          %727 = vmatpush1.msra.mxu0 0.0
          %728 = vmatprep.subr.mxu0 0.0
          %729 = vmatpush1.msra.mxu0 0.0
          %730 = vmatprep.subr.mxu0 0.0
          %731 = vmatpush1.msra.mxu0 0.0
          %732 = vmatprep.subr.mxu0 0.0
          %733 = vmatpush1.msra.mxu0 0.0
          %734 = vmatprep.subr.mxu0 0.0
          %735 = vmatpush1.msra.mxu0 0.0
          %736 = vmatprep.subr.mxu0 0.0
          %737 = vmatpush1.msra.mxu0 0.0
          %738 = vmatprep.subr.mxu0 0.0
          %739 = vmatpush1.msra.mxu0 0.0
          %740 = vmatprep.subr.mxu0 0.0
          %741 = vmatpush1.msra.mxu0 0.0
          %742 = vmatprep.subr.mxu0 0.0
          %743 = vmatpush1.msra.mxu0 0.0
          %744 = vmatprep.subr.mxu0 0.0
          %745 = vmatpush1.msra.mxu0 0.0
          %746 = vmatprep.subr.mxu0 0.0
          %747 = vmatpush1.msra.mxu0 0.0
          %748 = vmatprep.subr.mxu0 0.0
          %749 = vmatpush1.msra.mxu0 0.0
          %750 = vmatprep.subr.mxu0 0.0
          %751 = vmatpush1.msra.mxu0 0.0
          %752 = vmatprep.subr.mxu0 0.0
          %753 = vmatpush1.msra.mxu0 0.0
          %754 = vmatprep.subr.mxu0 0.0
          %755 = vmatpush1.msra.mxu0 0.0
          %756 = vmatprep.subr.mxu0 0.0
          %757 = vmatpush1.msra.mxu0 0.0
          %758 = vmatprep.subr.mxu0 0.0
          %759 = vmatpush1.msra.mxu0 0.0
          %760 = vmatprep.subr.mxu0 0.0
          %761 = vmatpush1.msra.mxu0 0.0
          %762 = vmatprep.mubr.f32.mxu0 0.0
          %763 = vmatmul.mubr.f32.gmra.mrb[0].mxu0 %v693
          %v764 = vpop.f32.mrb[0].mxu0
          %v765 = vadd.f32 %v689, %v764
          %v766 = vpop.f32.mrb[0].mxu0
          %767 = vmatprep.mubr.f32.mxu0 0.0
          %768 = vmatmul.mubr.f32.gmra.mrb[0].mxu0 %v696
          %v769 = vpop.f32.mrb[0].mxu0
          %v770 = vadd.f32 %v689, %v769
          %v771 = vpop.f32.mrb[0].mxu0
          %772 = vdwg.mxu0
          %vm773 = vcmask 130048
          %774 = vst.msk [vmem:[#allocation2] sm:$0xff] %vm773, %v765
          %775 = vst.msk [vmem:[#allocation2 + $0x8] sm:$0xff] %vm773, %v770
          %778 = vrot.lane.b32.xlu0 %v765, 96
          %v779 = vpop.permute.xlu0 %778
          %780 = vrot.lane.b32.xlu0 %v770, 96
          %v781 = vpop.permute.xlu0 %780
          %784 = vst.msk [vmem:[#allocation3] sm:$0xff] %vm773, %v779
          %785 = vst.msk [vmem:[#allocation3 + $0x8] sm:$0xff] %vm773, %v781
          %786 = vrot.lane.b32.xlu0 %v765, 64
          %v787 = vpop.permute.xlu0 %786
          %788 = vrot.lane.b32.xlu0 %v770, 64
          %v789 = vpop.permute.xlu0 %788
          %792 = vst.msk [vmem:[#allocation4] sm:$0xff] %vm773, %v787
          %793 = vst.msk [vmem:[#allocation4 + $0x8] sm:$0xff] %vm773, %v789
          %794 = vrot.lane.b32.xlu0 %v765, 112
          %v795 = vpop.permute.xlu0 %794
          %796 = vrot.lane.b32.xlu0 %v770, 112
          %v797 = vpop.permute.xlu0 %796
          %s800 = scalar_lea.vmem [#allocation2], 16
          %801 = vst.msk [vmem:[%s800] sm:$0xff] %vm773, %v795
          %802 = vst.msk [vmem:[%s800 + $0x8] sm:$0xff] %vm773, %v797
          %803 = vrot.lane.b32.xlu0 %v765, 80
          %v804 = vpop.permute.xlu0 %803
          %805 = vrot.lane.b32.xlu0 %v770, 80
          %v806 = vpop.permute.xlu0 %805
          %s809 = scalar_lea.vmem [#allocation3], 16
          %810 = vst.msk [vmem:[%s809] sm:$0xff] %vm773, %v804
          %811 = vst.msk [vmem:[%s809 + $0x8] sm:$0xff] %vm773, %v806
          %812 = vrot.lane.b32.xlu0 %v765, 48
          %v813 = vpop.permute.xlu0 %812
          %814 = vrot.lane.b32.xlu0 %v770, 48
          %v815 = vpop.permute.xlu0 %814
          %s818 = scalar_lea.vmem [#allocation4], 16
          %819 = vst.msk [vmem:[%s818] sm:$0xff] %vm773, %v813
          %820 = vst.msk [vmem:[%s818 + $0x8] sm:$0xff] %vm773, %v815
        $region104: #{tpu_custom_call.1} parent=79 // pred_fallthru
          _
        %s821 = smul.u32 %s42, 8
        %s822 = scalar_lea.vmem %s657, %s821
        %v823 = vld [vmem:[%s822] sm:$0xff]
        %v824 = vld [vmem:[%s673] sm:$0xff]
        %v825 = vld [vmem:[%s665] sm:$0xff]
        %s826 = scalar_lea.vmem [#allocation2], %s821
        %v827 = vld [vmem:[%s826] sm:$0xff]
        %v828 = vld [vmem:[%s826 + $0x10] sm:$0xff]
        %v829 = vld [vmem:[#allocation3] sm:$0xff]
        %v830 = vld [vmem:[#allocation3 + $0x8] sm:$0xff]
        %v831 = vld [vmem:[#allocation3 + $0x10] sm:$0xff]
        %v832 = vld [vmem:[#allocation3 + $0x18] sm:$0xff]
        %vm833 = vcmask 130048
        %v835 = vsel %vm833, %v827, 0
        %v838 = vsel %vm833, %v829, 0
        %v841 = vsel %vm833, %v830, 0
        %843 = vmatprep.subr.mxu0 0.0
        %844 = vmatpush1.xpose.msra.mxu0 %v838
        %845 = vmatprep.subr.mxu0 0.0
        %846 = vmatpush1.xpose.msra.mxu0 %v841
        %847 = vmatprep.subr.mxu0 0.0
        %848 = vmatpush1.xpose.msra.mxu0 0.0
        %849 = vmatprep.subr.mxu0 0.0
        %850 = vmatpush1.xpose.msra.mxu0 0.0
        %851 = vmatprep.subr.mxu0 0.0
        %852 = vmatpush1.xpose.msra.mxu0 0.0
        %853 = vmatprep.subr.mxu0 0.0
        %854 = vmatpush1.xpose.msra.mxu0 0.0
        %855 = vmatprep.subr.mxu0 0.0
        %856 = vmatpush1.xpose.msra.mxu0 0.0
        %857 = vmatprep.subr.mxu0 0.0
        %858 = vmatpush1.xpose.msra.mxu0 0.0
        %859 = vmatprep.subr.mxu0 0.0
        %860 = vmatpush1.xpose.msra.mxu0 0.0
        %861 = vmatprep.subr.mxu0 0.0
        %862 = vmatpush1.xpose.msra.mxu0 0.0
        %863 = vmatprep.subr.mxu0 0.0
        %864 = vmatpush1.xpose.msra.mxu0 0.0
        %865 = vmatprep.subr.mxu0 0.0
        %866 = vmatpush1.xpose.msra.mxu0 0.0
        %867 = vmatprep.subr.mxu0 0.0
        %868 = vmatpush1.xpose.msra.mxu0 0.0
        %869 = vmatprep.subr.mxu0 0.0
        %870 = vmatpush1.xpose.msra.mxu0 0.0
        %871 = vmatprep.subr.mxu0 0.0
        %872 = vmatpush1.xpose.msra.mxu0 0.0
        %873 = vmatprep.subr.mxu0 0.0
        %874 = vmatpush1.xpose.msra.mxu0 0.0
        %875 = vmatprep.subr.mxu0 0.0
        %876 = vmatpush1.xpose.msra.mxu0 0.0
        %877 = vmatprep.subr.mxu0 0.0
        %878 = vmatpush1.xpose.msra.mxu0 0.0
        %879 = vmatprep.subr.mxu0 0.0
        %880 = vmatpush1.xpose.msra.mxu0 0.0
        %881 = vmatprep.subr.mxu0 0.0
        %882 = vmatpush1.xpose.msra.mxu0 0.0
        %883 = vmatprep.subr.mxu0 0.0
        %884 = vmatpush1.xpose.msra.mxu0 0.0
        %885 = vmatprep.subr.mxu0 0.0
        %886 = vmatpush1.xpose.msra.mxu0 0.0
        %887 = vmatprep.subr.mxu0 0.0
        %888 = vmatpush1.xpose.msra.mxu0 0.0
        %889 = vmatprep.subr.mxu0 0.0
        %890 = vmatpush1.xpose.msra.mxu0 0.0
        %891 = vmatprep.subr.mxu0 0.0
        %892 = vmatpush1.xpose.msra.mxu0 0.0
        %893 = vmatprep.subr.mxu0 0.0
        %894 = vmatpush1.xpose.msra.mxu0 0.0
        %895 = vmatprep.subr.mxu0 0.0
        %896 = vmatpush1.xpose.msra.mxu0 0.0
        %897 = vmatprep.subr.mxu0 0.0
        %898 = vmatpush1.xpose.msra.mxu0 0.0
        %899 = vmatprep.subr.mxu0 0.0
        %900 = vmatpush1.xpose.msra.mxu0 0.0
        %901 = vmatprep.subr.mxu0 0.0
        %902 = vmatpush1.xpose.msra.mxu0 0.0
        %903 = vmatprep.subr.mxu0 0.0
        %904 = vmatpush1.xpose.msra.mxu0 0.0
        %905 = vmatprep.subr.mxu0 0.0
        %906 = vmatpush1.xpose.msra.mxu0 0.0
        %907 = vmatprep.mubr.f32.mxu0 0.0
        %908 = vmatmul.mubr.f32.gmra.mrb[0].mxu0 %v835
        %v909 = vpop.f32.mrb[0].mxu0
        %v910 = vadd.f32 %v825, %v909
        %v911 = vpop.f32.mrb[0].mxu0
        %912 = vdwg.mxu0
        %v914 = vsel %vm833, %v828, 0
        %v917 = vsel %vm833, %v831, 0
        %v920 = vsel %vm833, %v832, 0
        %922 = vmatprep.subr.mxu0 0.0
        %923 = vmatpush1.xpose.msra.mxu0 %v917
        %924 = vmatprep.subr.mxu0 0.0
        %925 = vmatpush1.xpose.msra.mxu0 %v920
        %926 = vmatprep.subr.mxu0 0.0
        %927 = vmatpush1.xpose.msra.mxu0 0.0
        %928 = vmatprep.subr.mxu0 0.0
        %929 = vmatpush1.xpose.msra.mxu0 0.0
        %930 = vmatprep.subr.mxu0 0.0
        %931 = vmatpush1.xpose.msra.mxu0 0.0
        %932 = vmatprep.subr.mxu0 0.0
        %933 = vmatpush1.xpose.msra.mxu0 0.0
        %934 = vmatprep.subr.mxu0 0.0
        %935 = vmatpush1.xpose.msra.mxu0 0.0
        %936 = vmatprep.subr.mxu0 0.0
        %937 = vmatpush1.xpose.msra.mxu0 0.0
        %938 = vmatprep.subr.mxu0 0.0
        %939 = vmatpush1.xpose.msra.mxu0 0.0
        %940 = vmatprep.subr.mxu0 0.0
        %941 = vmatpush1.xpose.msra.mxu0 0.0
        %942 = vmatprep.subr.mxu0 0.0
        %943 = vmatpush1.xpose.msra.mxu0 0.0
        %944 = vmatprep.subr.mxu0 0.0
        %945 = vmatpush1.xpose.msra.mxu0 0.0
        %946 = vmatprep.subr.mxu0 0.0
        %947 = vmatpush1.xpose.msra.mxu0 0.0
        %948 = vmatprep.subr.mxu0 0.0
        %949 = vmatpush1.xpose.msra.mxu0 0.0
        %950 = vmatprep.subr.mxu0 0.0
        %951 = vmatpush1.xpose.msra.mxu0 0.0
        %952 = vmatprep.subr.mxu0 0.0
        %953 = vmatpush1.xpose.msra.mxu0 0.0
        %954 = vmatprep.subr.mxu0 0.0
        %955 = vmatpush1.xpose.msra.mxu0 0.0
        %956 = vmatprep.subr.mxu0 0.0
        %957 = vmatpush1.xpose.msra.mxu0 0.0
        %958 = vmatprep.subr.mxu0 0.0
        %959 = vmatpush1.xpose.msra.mxu0 0.0
        %960 = vmatprep.subr.mxu0 0.0
        %961 = vmatpush1.xpose.msra.mxu0 0.0
        %962 = vmatprep.subr.mxu0 0.0
        %963 = vmatpush1.xpose.msra.mxu0 0.0
        %964 = vmatprep.subr.mxu0 0.0
        %965 = vmatpush1.xpose.msra.mxu0 0.0
        %966 = vmatprep.subr.mxu0 0.0
        %967 = vmatpush1.xpose.msra.mxu0 0.0
        %968 = vmatprep.subr.mxu0 0.0
        %969 = vmatpush1.xpose.msra.mxu0 0.0
        %970 = vmatprep.subr.mxu0 0.0
        %971 = vmatpush1.xpose.msra.mxu0 0.0
        %972 = vmatprep.subr.mxu0 0.0
        %973 = vmatpush1.xpose.msra.mxu0 0.0
        %974 = vmatprep.subr.mxu0 0.0
        %975 = vmatpush1.xpose.msra.mxu0 0.0
        %976 = vmatprep.subr.mxu0 0.0
        %977 = vmatpush1.xpose.msra.mxu0 0.0
        %978 = vmatprep.subr.mxu0 0.0
        %979 = vmatpush1.xpose.msra.mxu0 0.0
        %980 = vmatprep.subr.mxu0 0.0
        %981 = vmatpush1.xpose.msra.mxu0 0.0
        %982 = vmatprep.subr.mxu0 0.0
        %983 = vmatpush1.xpose.msra.mxu0 0.0
        %984 = vmatprep.subr.mxu0 0.0
        %985 = vmatpush1.xpose.msra.mxu0 0.0
        %986 = vmatprep.mubr.f32.mxu0 0.0
        %987 = vmatmul.mubr.f32.gmra.mrb[0].mxu0 %v914
        %v988 = vpop.f32.mrb[0].mxu0
        %v989 = vadd.f32 %v825, %v988
        %v990 = vpop.f32.mrb[0].mxu0
        %991 = vdwg.mxu0
        %v992 = vsel %vm833, %v910, -inf
        %993 = vmax.xlane.f32.xlu0 %v992
        %v994 = vpop.xlane.xlu0 %993
        %v995 = vsel %vm833, %v989, -inf
        %996 = vmax.xlane.f32.xlu0 %v995
        %v997 = vpop.xlane.xlu0 %996
        %v998 = vsub.f32 %v910, %v994
        %v999 = vsub.f32 %v989, %v997
        %v1000 = vmul.f32 %v998, 1.442695
        %v1001 = vpow.pop %v1000
        %v1002 = vmul.f32 %v999, 1.442695
        %v1003 = vpow.pop %v1002
        %v1004 = vsel %vm833, %v1001, 0.0
        %1005 = vadd.xlane.f32.xlu0 %v1004
        %v1006 = vpop.xlane.xlu0 %1005
        %v1007 = vsel %vm833, %v1003, 0.0
        %1008 = vadd.xlane.f32.xlu0 %v1007
        %v1009 = vpop.xlane.xlu0 %1008
        %v1010 = vrcp.pop %v1006
        %v1011 = vrcp.pop %v1009
        %v1012 = vmul.f32 %v1001, %v1010
        %v1013 = vmul.f32 %v1003, %v1011
        %1014 = vst.msk [vmem:[%s652] sm:$0xff] %vm833, %v1012
        %1015 = vst.msk [vmem:[%s652 + $0x8] sm:$0xff] %vm833, %v1013
        %v1016 = vld [vmem:[#allocation4] sm:$0xff]
        %v1017 = vld [vmem:[#allocation4 + $0x8] sm:$0xff]
        %v1018 = vld [vmem:[#allocation4 + $0x10] sm:$0xff]
        %v1019 = vld [vmem:[#allocation4 + $0x18] sm:$0xff]
        %v1021 = vsel %vm833, %v1012, 0
        %1023 = vmatprep.subr.mxu0 0.0
        %1024 = vmatpush1.msra.mxu0 %v1016
        %1025 = vmatprep.subr.mxu0 0.0
        %1026 = vmatpush1.msra.mxu0 %v1017
        %1027 = vmatprep.subr.mxu0 0.0
        %1028 = vmatpush1.msra.mxu0 0.0
        %1029 = vmatprep.subr.mxu0 0.0
        %1030 = vmatpush1.msra.mxu0 0.0
        %1031 = vmatprep.subr.mxu0 0.0
        %1032 = vmatpush1.msra.mxu0 0.0
        %1033 = vmatprep.subr.mxu0 0.0
        %1034 = vmatpush1.msra.mxu0 0.0
        %1035 = vmatprep.subr.mxu0 0.0
        %1036 = vmatpush1.msra.mxu0 0.0
        %1037 = vmatprep.subr.mxu0 0.0
        %1038 = vmatpush1.msra.mxu0 0.0
        %1039 = vmatprep.subr.mxu0 0.0
        %1040 = vmatpush1.msra.mxu0 0.0
        %1041 = vmatprep.subr.mxu0 0.0
        %1042 = vmatpush1.msra.mxu0 0.0
        %1043 = vmatprep.subr.mxu0 0.0
        %1044 = vmatpush1.msra.mxu0 0.0
        %1045 = vmatprep.subr.mxu0 0.0
        %1046 = vmatpush1.msra.mxu0 0.0
        %1047 = vmatprep.subr.mxu0 0.0
        %1048 = vmatpush1.msra.mxu0 0.0
        %1049 = vmatprep.subr.mxu0 0.0
        %1050 = vmatpush1.msra.mxu0 0.0
        %1051 = vmatprep.subr.mxu0 0.0
        %1052 = vmatpush1.msra.mxu0 0.0
        %1053 = vmatprep.subr.mxu0 0.0
        %1054 = vmatpush1.msra.mxu0 0.0
        %1055 = vmatprep.subr.mxu0 0.0
        %1056 = vmatpush1.msra.mxu0 0.0
        %1057 = vmatprep.subr.mxu0 0.0
        %1058 = vmatpush1.msra.mxu0 0.0
        %1059 = vmatprep.subr.mxu0 0.0
        %1060 = vmatpush1.msra.mxu0 0.0
        %1061 = vmatprep.subr.mxu0 0.0
        %1062 = vmatpush1.msra.mxu0 0.0
        %1063 = vmatprep.subr.mxu0 0.0
        %1064 = vmatpush1.msra.mxu0 0.0
        %1065 = vmatprep.subr.mxu0 0.0
        %1066 = vmatpush1.msra.mxu0 0.0
        %1067 = vmatprep.subr.mxu0 0.0
        %1068 = vmatpush1.msra.mxu0 0.0
        %1069 = vmatprep.subr.mxu0 0.0
        %1070 = vmatpush1.msra.mxu0 0.0
        %1071 = vmatprep.subr.mxu0 0.0
        %1072 = vmatpush1.msra.mxu0 0.0
        %1073 = vmatprep.subr.mxu0 0.0
        %1074 = vmatpush1.msra.mxu0 0.0
        %1075 = vmatprep.subr.mxu0 0.0
        %1076 = vmatpush1.msra.mxu0 0.0
        %1077 = vmatprep.subr.mxu0 0.0
        %1078 = vmatpush1.msra.mxu0 0.0
        %1079 = vmatprep.subr.mxu0 0.0
        %1080 = vmatpush1.msra.mxu0 0.0
        %1081 = vmatprep.subr.mxu0 0.0
        %1082 = vmatpush1.msra.mxu0 0.0
        %1083 = vmatprep.subr.mxu0 0.0
        %1084 = vmatpush1.msra.mxu0 0.0
        %1085 = vmatprep.subr.mxu0 0.0
        %1086 = vmatpush1.msra.mxu0 0.0
        %1087 = vmatprep.mubr.f32.mxu0 0.0
        %1088 = vmatmul.mubr.f32.gmra.mrb[0].mxu0 %v1021
        %v1089 = vpop.f32.mrb[0].mxu0
        %v1090 = vadd.f32 0.0, %v1089
        %v1091 = vpop.f32.mrb[0].mxu0
        %1092 = vdwg.mxu0
        %v1094 = vsel %vm833, %v1013, 0
        %1096 = vmatprep.subr.mxu0 0.0
        %1097 = vmatpush1.msra.mxu0 %v1018
        %1098 = vmatprep.subr.mxu0 0.0
        %1099 = vmatpush1.msra.mxu0 %v1019
        %1100 = vmatprep.subr.mxu0 0.0
        %1101 = vmatpush1.msra.mxu0 0.0
        %1102 = vmatprep.subr.mxu0 0.0
        %1103 = vmatpush1.msra.mxu0 0.0
        %1104 = vmatprep.subr.mxu0 0.0
        %1105 = vmatpush1.msra.mxu0 0.0
        %1106 = vmatprep.subr.mxu0 0.0
        %1107 = vmatpush1.msra.mxu0 0.0
        %1108 = vmatprep.subr.mxu0 0.0
        %1109 = vmatpush1.msra.mxu0 0.0
        %1110 = vmatprep.subr.mxu0 0.0
        %1111 = vmatpush1.msra.mxu0 0.0
        %1112 = vmatprep.subr.mxu0 0.0
        %1113 = vmatpush1.msra.mxu0 0.0
        %1114 = vmatprep.subr.mxu0 0.0
        %1115 = vmatpush1.msra.mxu0 0.0
        %1116 = vmatprep.subr.mxu0 0.0
        %1117 = vmatpush1.msra.mxu0 0.0
        %1118 = vmatprep.subr.mxu0 0.0
        %1119 = vmatpush1.msra.mxu0 0.0
        %1120 = vmatprep.subr.mxu0 0.0
        %1121 = vmatpush1.msra.mxu0 0.0
        %1122 = vmatprep.subr.mxu0 0.0
        %1123 = vmatpush1.msra.mxu0 0.0
        %1124 = vmatprep.subr.mxu0 0.0
        %1125 = vmatpush1.msra.mxu0 0.0
        %1126 = vmatprep.subr.mxu0 0.0
        %1127 = vmatpush1.msra.mxu0 0.0
        %1128 = vmatprep.subr.mxu0 0.0
        %1129 = vmatpush1.msra.mxu0 0.0
        %1130 = vmatprep.subr.mxu0 0.0
        %1131 = vmatpush1.msra.mxu0 0.0
        %1132 = vmatprep.subr.mxu0 0.0
        %1133 = vmatpush1.msra.mxu0 0.0
        %1134 = vmatprep.subr.mxu0 0.0
        %1135 = vmatpush1.msra.mxu0 0.0
        %1136 = vmatprep.subr.mxu0 0.0
        %1137 = vmatpush1.msra.mxu0 0.0
        %1138 = vmatprep.subr.mxu0 0.0
        %1139 = vmatpush1.msra.mxu0 0.0
        %1140 = vmatprep.subr.mxu0 0.0
        %1141 = vmatpush1.msra.mxu0 0.0
        %1142 = vmatprep.subr.mxu0 0.0
        %1143 = vmatpush1.msra.mxu0 0.0
        %1144 = vmatprep.subr.mxu0 0.0
        %1145 = vmatpush1.msra.mxu0 0.0
        %1146 = vmatprep.subr.mxu0 0.0
        %1147 = vmatpush1.msra.mxu0 0.0
        %1148 = vmatprep.subr.mxu0 0.0
        %1149 = vmatpush1.msra.mxu0 0.0
        %1150 = vmatprep.subr.mxu0 0.0
        %1151 = vmatpush1.msra.mxu0 0.0
        %1152 = vmatprep.subr.mxu0 0.0
        %1153 = vmatpush1.msra.mxu0 0.0
        %1154 = vmatprep.subr.mxu0 0.0
        %1155 = vmatpush1.msra.mxu0 0.0
        %1156 = vmatprep.subr.mxu0 0.0
        %1157 = vmatpush1.msra.mxu0 0.0
        %1158 = vmatprep.subr.mxu0 0.0
        %1159 = vmatpush1.msra.mxu0 0.0
        %1160 = vmatprep.mubr.f32.mxu0 0.0
        %1161 = vmatmul.mubr.f32.gmra.mrb[0].mxu0 %v1094
        %v1162 = vpop.f32.mrb[0].mxu0
        %v1163 = vadd.f32 0.0, %v1162
        %v1164 = vpop.f32.mrb[0].mxu0
        %1165 = vdwg.mxu0
        %1167 = vrot.lane.b32.xlu0 %v1163, 16
        %v1168 = vpop.permute.xlu0 %1167
        %v1170 = vsel %vm833, %v1090, %v1168
        %v1171 = vld [vmem:[%s5] sm:$0xff]
        %v1172 = vld [vmem:[%s5 + $0x8] sm:$0xff]
        %v1173 = vld [vmem:[%s5 + $0x10] sm:$0xff]
        %v1174 = vld [vmem:[%s5 + $0x18] sm:$0xff]
        %v1175 = vld [vmem:[#allocation8] sm:$0x1]
        %v1177 = vlaneseq
        %v1178 = vshrl.u32 %v1177, 7
        %v1179 = vsub.s32 0, %v1178
        %v1180 = vrot.slane %v1175, %v1179
        %vm1182 = vcmask 261120
        %v1184 = vsel %vm1182, %v1170, 0
        %1186 = vmatprep.subr.mxu0 0.0
        %1187 = vmatpush1.msra.mxu0 %v1171
        %1188 = vmatprep.subr.mxu0 0.0
        %1189 = vmatpush1.msra.mxu0 %v1172
        %1190 = vmatprep.subr.mxu0 0.0
        %1191 = vmatpush1.msra.mxu0 %v1173
        %1192 = vmatprep.subr.mxu0 0.0
        %1193 = vmatpush1.msra.mxu0 %v1174
        %1194 = vmatprep.subr.mxu0 0.0
        %1195 = vmatpush1.msra.mxu0 0.0
        %1196 = vmatprep.subr.mxu0 0.0
        %1197 = vmatpush1.msra.mxu0 0.0
        %1198 = vmatprep.subr.mxu0 0.0
        %1199 = vmatpush1.msra.mxu0 0.0
        %1200 = vmatprep.subr.mxu0 0.0
        %1201 = vmatpush1.msra.mxu0 0.0
        %1202 = vmatprep.subr.mxu0 0.0
        %1203 = vmatpush1.msra.mxu0 0.0
        %1204 = vmatprep.subr.mxu0 0.0
        %1205 = vmatpush1.msra.mxu0 0.0
        %1206 = vmatprep.subr.mxu0 0.0
        %1207 = vmatpush1.msra.mxu0 0.0
        %1208 = vmatprep.subr.mxu0 0.0
        %1209 = vmatpush1.msra.mxu0 0.0
        %1210 = vmatprep.subr.mxu0 0.0
        %1211 = vmatpush1.msra.mxu0 0.0
        %1212 = vmatprep.subr.mxu0 0.0
        %1213 = vmatpush1.msra.mxu0 0.0
        %1214 = vmatprep.subr.mxu0 0.0
        %1215 = vmatpush1.msra.mxu0 0.0
        %1216 = vmatprep.subr.mxu0 0.0
        %1217 = vmatpush1.msra.mxu0 0.0
        %1218 = vmatprep.subr.mxu0 0.0
        %1219 = vmatpush1.msra.mxu0 0.0
        %1220 = vmatprep.subr.mxu0 0.0
        %1221 = vmatpush1.msra.mxu0 0.0
        %1222 = vmatprep.subr.mxu0 0.0
        %1223 = vmatpush1.msra.mxu0 0.0
        %1224 = vmatprep.subr.mxu0 0.0
        %1225 = vmatpush1.msra.mxu0 0.0
        %1226 = vmatprep.subr.mxu0 0.0
        %1227 = vmatpush1.msra.mxu0 0.0
        %1228 = vmatprep.subr.mxu0 0.0
        %1229 = vmatpush1.msra.mxu0 0.0
        %1230 = vmatprep.subr.mxu0 0.0
        %1231 = vmatpush1.msra.mxu0 0.0
        %1232 = vmatprep.subr.mxu0 0.0
        %1233 = vmatpush1.msra.mxu0 0.0
        %1234 = vmatprep.subr.mxu0 0.0
        %1235 = vmatpush1.msra.mxu0 0.0
        %1236 = vmatprep.subr.mxu0 0.0
        %1237 = vmatpush1.msra.mxu0 0.0
        %1238 = vmatprep.subr.mxu0 0.0
        %1239 = vmatpush1.msra.mxu0 0.0
        %1240 = vmatprep.subr.mxu0 0.0
        %1241 = vmatpush1.msra.mxu0 0.0
        %1242 = vmatprep.subr.mxu0 0.0
        %1243 = vmatpush1.msra.mxu0 0.0
        %1244 = vmatprep.subr.mxu0 0.0
        %1245 = vmatpush1.msra.mxu0 0.0
        %1246 = vmatprep.subr.mxu0 0.0
        %1247 = vmatpush1.msra.mxu0 0.0
        %1248 = vmatprep.subr.mxu0 0.0
        %1249 = vmatpush1.msra.mxu0 0.0
        %1250 = vmatprep.mubr.f32.mxu0 0.0
        %1251 = vmatmul.mubr.f32.gmra.mrb[0].mxu0 %v1184
        %v1252 = vpop.f32.mrb[0].mxu0
        %v1253 = vadd.f32 %v1180, %v1252
        %v1254 = vpop.f32.mrb[0].mxu0
        %1255 = vdwg.mxu0
        %v1256 = vadd.f32 %v1253, %v823
        %v1257 = vld [vmem:[#allocation10] sm:$0x1]
        %v1258 = vld [vmem:[#allocation11] sm:$0x1]
        %v1259 = vsel %vm1182, %v1256, 0.0
        %1260 = vadd.xlane.f32.xlu0 %v1259
        %v1261 = vpop.xlane.xlu0 %1260
        %v1262 = vmul.f32 %v1256, %v1256
        %v1263 = vsel %vm1182, %v1262, 0.0
        %1264 = vadd.xlane.f32.xlu0 %v1263
        %v1265 = vpop.xlane.xlu0 %1264
        %v1266 = vrcp.pop 32.0
        %v1267 = vmul.f32 %v1261, %v1266
        %v1268 = vmul.f32 %v1265, %v1266
        %v1269 = vmul.f32 %v1267, %v1267
        %v1270 = vsub.f32 %v1268, %v1269
        %v1271 = vmax.f32 %v1270, 0.0
        %v1272 = vsub.f32 %v1256, %v1267
        %v1273 = vadd.f32 %v1271, 1e-05
        %v1274 = vrsqrt.pop %v1273
        %v1275 = vmul.f32 %v1272, %v1274
        %v1277 = vlaneseq
        %v1278 = vshrl.u32 %v1277, 7
        %v1279 = vsub.s32 0, %v1278
        %v1280 = vrot.slane %v1257, %v1279
        %v1282 = vmul.f32 %v1275, %v1280
        %v1284 = vlaneseq
        %v1285 = vshrl.u32 %v1284, 7
        %v1286 = vsub.s32 0, %v1285
        %v1287 = vrot.slane %v1258, %v1286
        %v1289 = vadd.f32 %v1282, %v1287
        %1291 = vset.pattern.permute.xlu0 0
        %1292 = vperm.xlu0 %1291, %v824
        %v1293 = vpop.permute.xlu0 %1292
        %v1295 = vmul.f32 %v1289, %v1293
        %v1296 = vld [vmem:[#allocation13] sm:$0xff]
        %v1297 = vld [vmem:[#allocation13 + $0x8] sm:$0xff]
        %v1298 = vld [vmem:[#allocation13 + $0x10] sm:$0xff]
        %v1299 = vld [vmem:[#allocation13 + $0x18] sm:$0xff]
        %v1300 = vld [vmem:[%s10] sm:$0x1]
        %v1302 = vlaneseq
        %v1303 = vshrl.u32 %v1302, 7
        %v1304 = vsub.s32 0, %v1303
        %v1305 = vrot.slane %v1300, %v1304
        %v1308 = vsel %vm1182, %v1295, 0
        %1310 = vmatprep.subr.mxu0 0.0
        %1311 = vmatpush1.msra.mxu0 %v1296
        %1312 = vmatprep.subr.mxu0 0.0
        %1313 = vmatpush1.msra.mxu0 %v1297
        %1314 = vmatprep.subr.mxu0 0.0
        %1315 = vmatpush1.msra.mxu0 %v1298
        %1316 = vmatprep.subr.mxu0 0.0
        %1317 = vmatpush1.msra.mxu0 %v1299
        %1318 = vmatprep.subr.mxu0 0.0
        %1319 = vmatpush1.msra.mxu0 0.0
        %1320 = vmatprep.subr.mxu0 0.0
        %1321 = vmatpush1.msra.mxu0 0.0
        %1322 = vmatprep.subr.mxu0 0.0
        %1323 = vmatpush1.msra.mxu0 0.0
        %1324 = vmatprep.subr.mxu0 0.0
        %1325 = vmatpush1.msra.mxu0 0.0
        %1326 = vmatprep.subr.mxu0 0.0
        %1327 = vmatpush1.msra.mxu0 0.0
        %1328 = vmatprep.subr.mxu0 0.0
        %1329 = vmatpush1.msra.mxu0 0.0
        %1330 = vmatprep.subr.mxu0 0.0
        %1331 = vmatpush1.msra.mxu0 0.0
        %1332 = vmatprep.subr.mxu0 0.0
        %1333 = vmatpush1.msra.mxu0 0.0
        %1334 = vmatprep.subr.mxu0 0.0
        %1335 = vmatpush1.msra.mxu0 0.0
        %1336 = vmatprep.subr.mxu0 0.0
        %1337 = vmatpush1.msra.mxu0 0.0
        %1338 = vmatprep.subr.mxu0 0.0
        %1339 = vmatpush1.msra.mxu0 0.0
        %1340 = vmatprep.subr.mxu0 0.0
        %1341 = vmatpush1.msra.mxu0 0.0
        %1342 = vmatprep.subr.mxu0 0.0
        %1343 = vmatpush1.msra.mxu0 0.0
        %1344 = vmatprep.subr.mxu0 0.0
        %1345 = vmatpush1.msra.mxu0 0.0
        %1346 = vmatprep.subr.mxu0 0.0
        %1347 = vmatpush1.msra.mxu0 0.0
        %1348 = vmatprep.subr.mxu0 0.0
        %1349 = vmatpush1.msra.mxu0 0.0
        %1350 = vmatprep.subr.mxu0 0.0
        %1351 = vmatpush1.msra.mxu0 0.0
        %1352 = vmatprep.subr.mxu0 0.0
        %1353 = vmatpush1.msra.mxu0 0.0
        %1354 = vmatprep.subr.mxu0 0.0
        %1355 = vmatpush1.msra.mxu0 0.0
        %1356 = vmatprep.subr.mxu0 0.0
        %1357 = vmatpush1.msra.mxu0 0.0
        %1358 = vmatprep.subr.mxu0 0.0
        %1359 = vmatpush1.msra.mxu0 0.0
        %1360 = vmatprep.subr.mxu0 0.0
        %1361 = vmatpush1.msra.mxu0 0.0
        %1362 = vmatprep.subr.mxu0 0.0
        %1363 = vmatpush1.msra.mxu0 0.0
        %1364 = vmatprep.subr.mxu0 0.0
        %1365 = vmatpush1.msra.mxu0 0.0
        %1366 = vmatprep.subr.mxu0 0.0
        %1367 = vmatpush1.msra.mxu0 0.0
        %1368 = vmatprep.subr.mxu0 0.0
        %1369 = vmatpush1.msra.mxu0 0.0
        %1370 = vmatprep.subr.mxu0 0.0
        %1371 = vmatpush1.msra.mxu0 0.0
        %1372 = vmatprep.subr.mxu0 0.0
        %1373 = vmatpush1.msra.mxu0 0.0
        %1374 = vmatprep.mubr.f32.mxu0 0.0
        %1375 = vmatmul.mubr.f32.gmra.mrb[0].mxu0 %v1308
        %v1376 = vpop.f32.mrb[0].mxu0
        %v1377 = vadd.f32 %v1305, %v1376
        %v1378 = vpop.f32.mrb[0].mxu0
        %1379 = vdwg.mxu0
        %v1380 = vmax.f32 %v1377, 0.0
        %v1381 = vld [vmem:[%s11] sm:$0xff]
        %v1382 = vld [vmem:[%s11 + $0x8] sm:$0xff]
        %v1383 = vld [vmem:[%s11 + $0x10] sm:$0xff]
        %v1384 = vld [vmem:[%s11 + $0x18] sm:$0xff]
        %v1385 = vld [vmem:[%s11 + $0x20] sm:$0xff]
        %v1386 = vld [vmem:[%s11 + $0x28] sm:$0xff]
        %v1387 = vld [vmem:[%s11 + $0x30] sm:$0xff]
        %v1388 = vld [vmem:[%s11 + $0x38] sm:$0xff]
        %v1389 = vld [vmem:[%s12] sm:$0x1]
        %v1391 = vlaneseq
        %v1392 = vshrl.u32 %v1391, 7
        %v1393 = vsub.s32 0, %v1392
        %v1394 = vrot.slane %v1389, %v1393
        %vm1396 = vcmask 523264
        %v1398 = vsel %vm1396, %v1380, 0
        %1400 = vmatprep.subr.mxu0 0.0
        %1401 = vmatpush1.msra.mxu0 %v1381
        %1402 = vmatprep.subr.mxu0 0.0
        %1403 = vmatpush1.msra.mxu0 %v1382
        %1404 = vmatprep.subr.mxu0 0.0
        %1405 = vmatpush1.msra.mxu0 %v1383
        %1406 = vmatprep.subr.mxu0 0.0
        %1407 = vmatpush1.msra.mxu0 %v1384
        %1408 = vmatprep.subr.mxu0 0.0
        %1409 = vmatpush1.msra.mxu0 %v1385
        %1410 = vmatprep.subr.mxu0 0.0
        %1411 = vmatpush1.msra.mxu0 %v1386
        %1412 = vmatprep.subr.mxu0 0.0
        %1413 = vmatpush1.msra.mxu0 %v1387
        %1414 = vmatprep.subr.mxu0 0.0
        %1415 = vmatpush1.msra.mxu0 %v1388
        %1416 = vmatprep.subr.mxu0 0.0
        %1417 = vmatpush1.msra.mxu0 0.0
        %1418 = vmatprep.subr.mxu0 0.0
        %1419 = vmatpush1.msra.mxu0 0.0
        %1420 = vmatprep.subr.mxu0 0.0
        %1421 = vmatpush1.msra.mxu0 0.0
        %1422 = vmatprep.subr.mxu0 0.0
        %1423 = vmatpush1.msra.mxu0 0.0
        %1424 = vmatprep.subr.mxu0 0.0
        %1425 = vmatpush1.msra.mxu0 0.0
        %1426 = vmatprep.subr.mxu0 0.0
        %1427 = vmatpush1.msra.mxu0 0.0
        %1428 = vmatprep.subr.mxu0 0.0
        %1429 = vmatpush1.msra.mxu0 0.0
        %1430 = vmatprep.subr.mxu0 0.0
        %1431 = vmatpush1.msra.mxu0 0.0
        %1432 = vmatprep.subr.mxu0 0.0
        %1433 = vmatpush1.msra.mxu0 0.0
        %1434 = vmatprep.subr.mxu0 0.0
        %1435 = vmatpush1.msra.mxu0 0.0
        %1436 = vmatprep.subr.mxu0 0.0
        %1437 = vmatpush1.msra.mxu0 0.0
        %1438 = vmatprep.subr.mxu0 0.0
        %1439 = vmatpush1.msra.mxu0 0.0
        %1440 = vmatprep.subr.mxu0 0.0
        %1441 = vmatpush1.msra.mxu0 0.0
        %1442 = vmatprep.subr.mxu0 0.0
        %1443 = vmatpush1.msra.mxu0 0.0
        %1444 = vmatprep.subr.mxu0 0.0
        %1445 = vmatpush1.msra.mxu0 0.0
        %1446 = vmatprep.subr.mxu0 0.0
        %1447 = vmatpush1.msra.mxu0 0.0
        %1448 = vmatprep.subr.mxu0 0.0
        %1449 = vmatpush1.msra.mxu0 0.0
        %1450 = vmatprep.subr.mxu0 0.0
        %1451 = vmatpush1.msra.mxu0 0.0
        %1452 = vmatprep.subr.mxu0 0.0
        %1453 = vmatpush1.msra.mxu0 0.0
        %1454 = vmatprep.subr.mxu0 0.0
        %1455 = vmatpush1.msra.mxu0 0.0
        %1456 = vmatprep.subr.mxu0 0.0
        %1457 = vmatpush1.msra.mxu0 0.0
        %1458 = vmatprep.subr.mxu0 0.0
        %1459 = vmatpush1.msra.mxu0 0.0
        %1460 = vmatprep.subr.mxu0 0.0
        %1461 = vmatpush1.msra.mxu0 0.0
        %1462 = vmatprep.subr.mxu0 0.0
        %1463 = vmatpush1.msra.mxu0 0.0
        %1464 = vmatprep.mubr.f32.mxu0 0.0
        %1465 = vmatmul.mubr.f32.gmra.mrb[0].mxu0 %v1398
        %v1466 = vpop.f32.mrb[0].mxu0
        %v1467 = vadd.f32 %v1394, %v1466
        %v1468 = vpop.f32.mrb[0].mxu0
        %1469 = vdwg.mxu0
        %v1470 = vadd.f32 %v1467, %v1295
        %v1471 = vld [vmem:[%s13] sm:$0x1]
        %v1472 = vld [vmem:[%s14] sm:$0x1]
        %v1473 = vsel %vm1182, %v1470, 0.0
        %1474 = vadd.xlane.f32.xlu0 %v1473
        %v1475 = vpop.xlane.xlu0 %1474
        %v1476 = vmul.f32 %v1470, %v1470
        %v1477 = vsel %vm1182, %v1476, 0.0
        %1478 = vadd.xlane.f32.xlu0 %v1477
        %v1479 = vpop.xlane.xlu0 %1478
        %v1480 = vmul.f32 %v1475, %v1266
        %v1481 = vmul.f32 %v1479, %v1266
        %v1482 = vmul.f32 %v1480, %v1480
        %v1483 = vsub.f32 %v1481, %v1482
        %v1484 = vmax.f32 %v1483, 0.0
        %v1485 = vsub.f32 %v1470, %v1480
        %v1486 = vadd.f32 %v1484, 1e-05
        %v1487 = vrsqrt.pop %v1486
        %v1488 = vmul.f32 %v1485, %v1487
        %v1490 = vlaneseq
        %v1491 = vshrl.u32 %v1490, 7
        %v1492 = vsub.s32 0, %v1491
        %v1493 = vrot.slane %v1471, %v1492
        %v1495 = vmul.f32 %v1488, %v1493
        %v1497 = vlaneseq
        %v1498 = vshrl.u32 %v1497, 7
        %v1499 = vsub.s32 0, %v1498
        %v1500 = vrot.slane %v1472, %v1499
        %v1502 = vadd.f32 %v1495, %v1500
        %v1503 = vmul.f32 %v1502, %v1293
        %1504 = vst.msk [vmem:[%s645] sm:$0xff] %vm1182, %v1503
        %s1505 = sand.u32 %s393, 1
        %s1506 = scalar_lea.sflag [#allocation7], %s1505
        %s1507 = sand.u32 %s393, 1
        %s1508 = smul.addr %s1507, 8
        %s1509 = scalar_lea.vmem [#allocation14], %s1508
        %s1510 = sand.u32 %s421, 1
        %s1511 = scalar_lea.sflag [#allocation16], %s1510
        %s1512 = sand.u32 %s421, 1
        %s1513 = smul.addr %s1512, 16
        %s1514 = scalar_lea.vmem [#allocation15], %s1513
        // Predicated region
        $region105: #{tpu_custom_call.1} parent=79 // pred_check
          %p1515 = pneg %p403
        $region106: #{tpu_custom_call.1} parent=79 // pred_check_branch
          %1517 = sbr.rel (%p1515) target = $region108
        $region107: #{tpu_custom_call.1} parent=79 // pred_region
          %s1519 = ssub.s32 128, 128
          %1520 = vsyncadd %s1506, %s1519
          %s1521 = smul.addr %s41, 2
          %s1522 = sadd.s32 %s42, %s1521
          %s1523 = smul.addr %s1522, 128
          %s1524 = scalar_lea.hbm %s15, %s1523
          %s1526 = sshll.u32 %s1509, 4
          %s1527 = int_to_ptr.vmem [resolvable:$true] %s1526
          %1529 = dma.vmem_to_hbm [thread:$0]  %s1527, 128, %s1524, %s1506
        $region108: #{tpu_custom_call.1} parent=79 // pred_fallthru
          _
        // Predicated region
        $region109: #{tpu_custom_call.1} parent=79 // pred_check
          %p1530 = pneg %p431
        $region110: #{tpu_custom_call.1} parent=79 // pred_check_branch
          %1532 = sbr.rel (%p1530) target = $region112
        $region111: #{tpu_custom_call.1} parent=79 // pred_region
          %s1534 = ssub.s32 256, 256
          %1535 = vsyncadd %s1511, %s1534
          %s1536 = smul.addr %s41, 2
          %s1537 = sadd.s32 %s42, %s1536
          %s1538 = smul.addr %s1537, 128
          %s1539 = scalar_lea.hbm %s16, %s1538
          %s1540 = sshll.u32 %s1514, 4
          %s1541 = int_to_ptr.vmem [resolvable:$true] %s1540
          %1546 = dma.vmem_to_hbm [thread:$0]  %s1541, 256, %s1539, %s1511, 128, 512, 8
        $region112: #{tpu_custom_call.1} parent=79 // pred_fallthru
          _
      $region80: #{tpu_custom_call.1} parent=5 // pred_fallthru
        _
      %p1547 = scmp.le.s32.totalorder 2, %s32
      // Predicated region
      $region113: #{tpu_custom_call.1} parent=5 // pred_check
        %p1548 = pneg %p1547
      $region114: #{tpu_custom_call.1} parent=5 // pred_check_branch
        %1550 = sbr.rel (%p1548) target = $region116
      $region115: #{tpu_custom_call.1} parent=5 // pred_region
        %s1551 = ssub.s32 %s32, 2
        // Predicated region
        $region117: #{tpu_custom_call.1} parent=115 // pred_check
          %p1552 = pneg %p409
        $region118: #{tpu_custom_call.1} parent=115 // pred_check_branch
          %1554 = sbr.rel (%p1552) target = $region120
        $region119: #{tpu_custom_call.1} parent=115 // pred_region
          %s1555 = sand.u32 %s394, 1
          %s1556 = scalar_lea.sflag [#allocation7], %s1555
          %s1557 = sand.u32 %s394, 1
          %s1558 = smul.addr %s1557, 8
          %s1559 = scalar_lea.vmem [#allocation14], %s1558
          %1560 = dma.done %s1556, 128
        $region120: #{tpu_custom_call.1} parent=115 // pred_fallthru
          _
        // Predicated region
        $region121: #{tpu_custom_call.1} parent=115 // pred_check
          %p1561 = pneg %p437
        $region122: #{tpu_custom_call.1} parent=115 // pred_check_branch
          %1563 = sbr.rel (%p1561) target = $region124
        $region123: #{tpu_custom_call.1} parent=115 // pred_region
          %s1564 = sand.u32 %s422, 1
          %s1565 = scalar_lea.sflag [#allocation16], %s1564
          %s1566 = sand.u32 %s422, 1
          %s1567 = smul.addr %s1566, 16
          %s1568 = scalar_lea.vmem [#allocation15], %s1567
          %1569 = dma.done %s1565, 256
        $region124: #{tpu_custom_call.1} parent=115 // pred_fallthru
          _
      $region116: #{tpu_custom_call.1} parent=5 // pred_fallthru
        _
    $region6: #{tpu_custom_call.1} parent=1 // loop_footer
      %s36 = sadd.s32 1, %s32
    $region7: #{tpu_custom_call.1} parent=1 // loop_footer_branch
      %31 = sbr.rel target = $region3
    $region8: #{tpu_custom_call.1} parent=1 // loop_exit
      _
    %1570 = vsyncpa [#allocation6], 1
    %s1571 = scalar_lea.sflag [#allocation6], 1
    %1572 = vsyncpa %s1571, 1
    %1573 = vsyncpa [#allocation9], 1
    %1574 = vsyncpa [#allocation12], 1
    %1575 = vsyncpa [#allocation7], 1
    %s1576 = scalar_lea.sflag [#allocation7], 1
    %1577 = vsyncpa %s1576, 1
    %1578 = vsyncpa [#allocation16], 1
    %s1579 = scalar_lea.sflag [#allocation16], 1
    %1580 = vsyncpa %s1579, 1

</llo_original>
